<compile_context>
chip_gen: v5e
topology: v5e:2x2
jax: 0.10.0
libtpu: 0.0.40
codegen_flags: <defaults>
</compile_context>

<pallas_src>
import functools

import jax
import jax.numpy as jnp
from jax.experimental import pallas as pl
from jax.experimental.pallas import tpu as pltpu


# ----------------------------------------------------------------------------
# Fused kernel
# ----------------------------------------------------------------------------
def _bottleneck_kernel(x_ref, wd_ref, bd_ref, w12_ref, b12_ref, dwk_ref, dwb_ref,
                       wg1_ref, bg1_ref, wg2_ref, bg2_ref,
                       wu_ref, bu_ref, bns_ref, bnb_ref, wid_ref, bid_ref,
                       o_ref, *, H, W, D, bb, rescaled_identity, compute_dtype):
    """Fused BottleNeck forward for `bb` images (one grid step).

    Layout: rows = bb*H (one row per (image, h)), lanes = W*channels
    (pixel-major, channel-minor).  x_ref: (R, W*Cin), o_ref: (R, W*Cout).
    """
    R = bb * H                      # matmul M / sublane extent of this block
    L = W * D                       # lane extent of the lite streams

    x32 = x_ref[...]                            # (R, W*Cin) f32
    xc = x32.astype(compute_dtype)              # cast once; reused by w_down & w_id

    def mm(a, w_ref):                           # MXU matmul, f32 accumulation
        return jnp.dot(a, w_ref[...], preferred_element_type=jnp.float32)

    xd = mm(xc, wd_ref) + bd_ref[...]           # conv1x1_down       (R, L) f32

    # Vertical-neighbour validity (rows at image top/bottom), shared by all lites.
    h_ids = jax.lax.broadcasted_iota(jnp.int32, (R, 1), 0) % H
    up_ok = (h_ids != 0).astype(jnp.float32)        # row h-1 exists
    dn_ok = (h_ids != H - 1).astype(jnp.float32)    # row h+1 exists

    dwk = dwk_ref[...]                          # (9, L)  BN + horiz edge masks folded
    dwb = dwb_ref[...]                          # (1, L)

    def lite(t):                                # one Lite block: (R, L) -> (R, L)
        # Folded pointwise pair (x@w1+b1)@w2+b2, applied per pixel via the
        # block-diagonal weight (no relayout between pointwise and depthwise).
        y = mm(t.astype(compute_dtype), w12_ref) + b12_ref[...]
        # Depthwise 3x3, padding=1: in-register shifted accumulation.  Vertical
        # shifts are sublane rolls, horizontal shifts are lane rolls by D;
        # wrapped-in values are zeroed by up_ok/dn_ok (rows) and by the edge
        # masks already folded into dwk (lanes).  Shifts use the XLU slot.
        rows = (pltpu.roll(y, 1, 0) * up_ok,        # ky=0 : in[h-1, w+kx-1]
                y,                                  # ky=1 : in[h  , w+kx-1]
                pltpu.roll(y, R - 1, 0) * dn_ok)    # ky=2 : in[h+1, w+kx-1]
        acc = jnp.zeros((R, L), jnp.float32)
        for ky in range(3):
            yv = rows[ky]
            acc += dwk[3 * ky + 0:3 * ky + 1] * pltpu.roll(yv, D, 1)      # kx=0: w-1
            acc += dwk[3 * ky + 1:3 * ky + 2] * yv                        # kx=1: w
            acc += dwk[3 * ky + 2:3 * ky + 3] * pltpu.roll(yv, L - D, 1)  # kx=2: w+1
        return jnp.maximum(acc + dwb, 0.0)          # folded BN shift + ReLU

    # Chained lite blocks: Lite^1..Lite^4 of xd (Lite is deterministic, so this
    # matches the PyTorch graph with 4 evaluations instead of 10).
    l1 = lite(xd)
    l2 = lite(l1)
    l3 = lite(l2)
    l4 = lite(l3)

    wg1 = wg1_ref[...]                          # (L, Gp)  GAP/(H*W) + transpose folded
    bg1 = bg1_ref[...]                          # (1, Gp)
    wg2 = wg2_ref[...]                          # (Gp, L)  lane-tiled
    bg2 = bg2_ref[...]                          # (1, L)

    def gated(l):                               # squeeze-excite gate: (R, L) -> (R, L)
        l3d = l.reshape(bb, H, L)
        g = jnp.sum(l3d, axis=1)                                   # (bb, L)
        h = jnp.maximum(
            jnp.dot(g, wg1, preferred_element_type=jnp.float32) + bg1, 0.0)
        gate = jax.nn.sigmoid(
            jnp.dot(h, wg2, preferred_element_type=jnp.float32) + bg2)   # (bb, L)
        return (l3d * gate[:, None, :]).reshape(R, L)

    combined = gated(l1) + gated(l2) + gated(l3) + gated(l4)

    # conv1x1_up + residual + BN(eval, folded) + ReLU; lane-dense (W*Cout) store.
    up = mm(combined.astype(compute_dtype), wu_ref) + bu_ref[...]
    if rescaled_identity:
        idn = mm(xc, wid_ref) + bid_ref[...]
    else:
        idn = x32                               # requires Cin == Cout
    o_ref[...] = jnp.maximum((idn + up) * bns_ref[...] + bnb_ref[...], 0.0)


# ----------------------------------------------------------------------------
# Host-side folds + wrapper
# ----------------------------------------------------------------------------
def _fold_params(p, H, W, compute_dtype):
    """Algebraic folds + re-layout into the pixel-major/channel-minor format."""
    f32 = jnp.float32
    cdt = compute_dtype
    D = p['w1'].shape[0]
    G = p['wg1'].shape[0]
    Gp = max(8, G)                 # pad the tiny gate hidden dim for the MXU

    def bdiag(w):                  # (ci, co) -> block-diag (W*ci, W*co)
        return jnp.kron(jnp.eye(W, dtype=f32), w.astype(f32))

    def lane_tile(v):              # (1, C) -> (1, W*C), lane = w*C + c
        return jnp.tile(v.reshape(1, -1).astype(f32), (1, W))

    # Fold the two back-to-back pointwise 1x1s (fold kept in f32 for accuracy).
    w12 = jnp.dot(p['w1'], p['w2'], preferred_element_type=f32)
    b12 = jnp.dot(p['b1'], p['w2'], preferred_element_type=f32) + p['b2']

    # Fold lite BN into the depthwise taps/bias, lane-tile over W, and fold the
    # horizontal (dx) edge masks directly into the tap weights.
    dwk = (p['dwk'].reshape(9, D) * p['lite_bn_scale'].reshape(1, D)).astype(f32)
    dwb = (p['dwb'] * p['lite_bn_scale'] + p['lite_bn_shift']).astype(f32)
    dwk_t = jnp.tile(dwk, (1, W))                                 # (9, W*D)
    lane_w = jnp.arange(W * D) // D                               # pixel column per lane
    left_ok = (lane_w != 0).astype(f32)[None, :]                  # valid for kx == 0
    right_ok = (lane_w != W - 1).astype(f32)[None, :]             # valid for kx == 2
    kx = jnp.arange(9) % 3
    edge = jnp.where((kx == 0)[:, None], left_ok,
                     jnp.where((kx == 2)[:, None], right_ok, 1.0))
    dwk_t = dwk_t * edge

    # Gate: fold GAP averaging (1/(H*W)) and the transpose into the first linear.
    wg1_pad = jnp.zeros((D, Gp), f32).at[:, :G].set(p['wg1'].T.astype(f32))
    wg1_f = jnp.tile(wg1_pad, (W, 1)) / float(H * W)              # (W*D, Gp)
    bg1_p = jnp.zeros((1, Gp), f32).at[:, :G].set(p['bg1'].reshape(1, G).astype(f32))
    wg2_pad = jnp.zeros((Gp, D), f32).at[:G, :].set(p['wg2'].astype(f32))
    wg2_t = jnp.tile(wg2_pad, (1, W))                             # (Gp, W*D)

    return dict(
        w_down=bdiag(p['w_down']).astype(cdt), b_down=lane_tile(p['b_down']),
        w12=bdiag(w12).astype(cdt), b12=lane_tile(b12),
        dwk=dwk_t, dwb=lane_tile(dwb),
        wg1=wg1_f, bg1=bg1_p, wg2=wg2_t, bg2=lane_tile(p['bg2']),
        w_up=bdiag(p['w_up']).astype(cdt), b_up=lane_tile(p['b_up']),
        bn_scale=lane_tile(p['bn_scale']), bn_shift=lane_tile(p['bn_shift']),
        w_id=bdiag(p['w_id']).astype(cdt), b_id=lane_tile(p['b_id']),
    )


def _pick_batch_block(B, rows_per_image, *, target_rows=256, min_grid_steps=1):
    """Images per grid step.

    target_rows ~ matmul M target (256 fills the v6e/v7x 256-wide MXU; use 128
    on v5e).  min_grid_steps=2 keeps both v7x TensorCores busy when the batch
    allows it; 1 lets a single bigger step win on single-TC chips (v5e/v6e).
    """
    bb = 1
    while (B % (bb * 2) == 0
           and (bb * 2) * rows_per_image <= target_rows
           and B // (bb * 2) >= min_grid_steps):
        bb *= 2
    return bb


def _vmem_limit_bytes(weights, rows, lane_in, lane_mid, lane_out):
    """Explicit VMEM budget: resident weights + double-buffered I/O blocks +
    in-flight f32 temporaries, clamped below v7x's 64 MiB physical VMEM."""
    w_bytes = sum(int(a.size) * a.dtype.itemsize for a in weights)
    io_bytes = 2 * 4 * rows * (lane_in + lane_out)
    act_bytes = 16 * 4 * rows * max(lane_in, lane_mid, lane_out)
    est = w_bytes + io_bytes + act_bytes
    return int(min(max(2 * est, 32 * 1024 * 1024), 60 * 1024 * 1024))


def bottleneck_forward(x_nchw, params, rescaled_identity=False, batch_block=None,
                       compute_dtype=jnp.bfloat16, target_rows=256,
                       min_grid_steps=1):
    """Fused BottleNeck forward. Accepts/returns NCHW like the PyTorch module."""
    B, Cin, H, W = x_nchw.shape
    D = params['w1'].shape[0]
    Cout = params['w_up'].shape[1]
    if not rescaled_identity:
        assert Cin == Cout, "residual add requires in_chan == out_chan"

    p = _fold_params(params, H, W, compute_dtype)
    bb = batch_block if batch_block is not None else _pick_batch_block(
        B, H, target_rows=target_rows, min_grid_steps=min_grid_steps)
    assert B % bb == 0

    # Pixel-major / channel-minor layout: rows = B*H, lanes = W*C.  Keeps every
    # in-kernel tensor lane-dense (best when W*D, W*Cin, W*Cout are multiples of
    # 128) and makes the output store a full-width vst.
    x = jnp.transpose(x_nchw, (0, 2, 3, 1)).astype(jnp.float32).reshape(B * H, W * Cin)
    # TODO(synk): for bandwidth-bound shapes the input/output could be carried in
    # bf16; kept in f32 so the residual path matches the f32 PyTorch module.

    kernel = functools.partial(
        _bottleneck_kernel, H=H, W=W, D=D, bb=bb,
        rescaled_identity=rescaled_identity, compute_dtype=compute_dtype)

    weights = (p['w_down'], p['b_down'], p['w12'], p['b12'], p['dwk'], p['dwb'],
               p['wg1'], p['bg1'], p['wg2'], p['bg2'],
               p['w_up'], p['b_up'], p['bn_scale'], p['bn_shift'],
               p['w_id'], p['b_id'])

    def full(a):  # small weight, fully resident (same block index -> fetched once)
        return pl.BlockSpec(a.shape, lambda i: (0, 0))

    in_specs = ([pl.BlockSpec((bb * H, W * Cin), lambda i: (i, 0))]
                + [full(a) for a in weights])

    vmem_limit = _vmem_limit_bytes(weights, bb * H, W * Cin, W * D, W * Cout)

    out = pl.pallas_call(
        kernel,
        out_shape=jax.ShapeDtypeStruct((B * H, W * Cout), jnp.float32),
        grid=(B // bb,),
        in_specs=in_specs,
        out_specs=pl.BlockSpec((bb * H, W * Cout), lambda i: (i, 0)),
        compiler_params=pltpu.CompilerParams(
            dimension_semantics=("parallel",),   # batch blocks -> megacore on v7x
            vmem_limit_bytes=vmem_limit),
    )(x, *weights)

    out = out.reshape(B, H, W, Cout)
    return jnp.transpose(out, (0, 3, 1, 2))      # NHWC -> NCHW


# ----------------------------------------------------------------------------
# Parameters
# ----------------------------------------------------------------------------
def init_params(key, in_chan, out_chan, reduction_ratio=4):
    D = out_chan // reduction_ratio
    G = D // 16
    assert G >= 1, "down_channels // 16 must be >= 1 (as implied by the PyTorch module)"
    ks = jax.random.split(key, 24)
    rnd = lambda k, shape: 0.15 * jax.random.normal(k, shape, dtype=jnp.float32)
    eps = 1e-5

    def bn_fold(kg, kb, km, kv, c):
        gamma = 1.0 + 0.1 * jax.random.normal(kg, (c,), jnp.float32)
        beta = 0.1 * jax.random.normal(kb, (c,), jnp.float32)
        mean = 0.1 * jax.random.normal(km, (c,), jnp.float32)
        var = 1.0 + 0.1 * jnp.abs(jax.random.normal(kv, (c,), jnp.float32))
        scale = gamma * jax.lax.rsqrt(var + eps)
        shift = beta - mean * scale
        return scale.reshape(1, c), shift.reshape(1, c)

    lite_s, lite_b = bn_fold(ks[12], ks[13], ks[14], ks[15], D)
    bn_s, bn_b = bn_fold(ks[16], ks[17], ks[18], ks[19], out_chan)
    return dict(
        w_down=rnd(ks[0], (in_chan, D)), b_down=rnd(ks[1], (1, D)),
        w1=rnd(ks[2], (D, D)), b1=rnd(ks[3], (1, D)),
        w2=rnd(ks[4], (D, D)), b2=rnd(ks[5], (1, D)),
        dwk=rnd(ks[6], (9, 1, D)), dwb=rnd(ks[7], (1, D)),
        lite_bn_scale=lite_s, lite_bn_shift=lite_b,
        wg1=rnd(ks[8], (G, D)), bg1=rnd(ks[9], (G, 1)),
        wg2=rnd(ks[10], (G, D)), bg2=rnd(ks[11], (1, D)),
        w_up=rnd(ks[20], (D, out_chan)), b_up=rnd(ks[21], (1, out_chan)),
        bn_scale=bn_s, bn_shift=bn_b,
        w_id=rnd(ks[22], (in_chan, out_chan)), b_id=rnd(ks[23], (1, out_chan)),
    )


# ----------------------------------------------------------------------------
# Pure-JAX reference (same math, plain XLA ops) for correctness check
# ----------------------------------------------------------------------------
def ref_forward(x_nchw, p, rescaled_identity=False):
    HIGH = jax.lax.Precision.HIGHEST
    x = jnp.transpose(x_nchw, (0, 2, 3, 1)).astype(jnp.float32)
    _, H, W, _ = x.shape

    def c1x1(t, w, b):
        return jnp.einsum('bhwc,cd->bhwd', t, w, precision=HIGH) + b.reshape(1, 1, 1, -1)

    def lite(t):
        y = c1x1(t, p['w1'], p['b1'])
        y = c1x1(y, p['w2'], p['b2'])
        yp = jnp.pad(y, ((0, 0), (1, 1), (1, 1), (0, 0)))
        acc = jnp.zeros_like(y)
        for dy in range(3):
            for dx in range(3):
                acc = acc + yp[:, dy:dy + H, dx:dx + W, :] * p['dwk'][dy * 3 + dx, 0].reshape(1, 1, 1, -1)
        acc = acc + p['dwb'].reshape(1, 1, 1, -1)
        acc = acc * p['lite_bn_scale'].reshape(1, 1, 1, -1) + p['lite_bn_shift'].reshape(1, 1, 1, -1)
        return jnp.maximum(acc, 0.0)

    def gated(t):
        g = jnp.mean(t, axis=(1, 2))
        h = jnp.maximum(jnp.dot(g, p['wg1'].T, precision=HIGH) + p['bg1'].reshape(-1), 0.0)
        s = jax.nn.sigmoid(jnp.dot(h, p['wg2'], precision=HIGH) + p['bg2'].reshape(-1))
        return t * s[:, None, None, :]

    identity = x
    xd = c1x1(x, p['w_down'], p['b_down'])
    l1 = lite(xd)
    l2 = lite(lite(xd))
    l3 = lite(lite(lite(xd)))
    l4 = lite(lite(lite(lite(xd))))
    combined = gated(l1) + gated(l2) + gated(l3) + gated(l4)
    up = c1x1(combined, p['w_up'], p['b_up'])
    if rescaled_identity:
        identity = c1x1(identity, p['w_id'], p['b_id'])
    r = identity + up
    r = r * p['bn_scale'].reshape(1, 1, 1, -1) + p['bn_shift'].reshape(1, 1, 1, -1)
    r = jnp.maximum(r, 0.0)
    return jnp.transpose(r, (0, 3, 1, 2))


# ----------------------------------------------------------------------------
if __name__ == "__main__":
    # in_chan must equal out_chan when rescaled_identity=False (residual add).
    # out_chan=64 -> down_channels D=16, gate hidden G=1; W*D = 128 lanes.
    B, C_in, H, W = 2, 64, 8, 8
    C_out = 64
    key = jax.random.PRNGKey(0)
    kx, kp = jax.random.split(key)
    x = jax.random.normal(kx, (B, C_in, H, W), dtype=jnp.float32)
    params = init_params(kp, C_in, C_out)

    # default path: bf16 MXU operands, f32 accumulation
    fwd = jax.jit(functools.partial(bottleneck_forward, rescaled_identity=False))
    out = jax.block_until_ready(fwd(x, params))
    ref = ref_forward(x, params, rescaled_identity=False)
    assert out.shape == (B, C_out, H, W)
    assert bool(jnp.isfinite(out).all())
    assert bool(jnp.allclose(out, ref, atol=5e-2, rtol=5e-2)), \
        float(jnp.max(jnp.abs(out - ref)))

    # rescaled-identity variant (conv_identity on the residual path)
    fwd_r = jax.jit(functools.partial(bottleneck_forward, rescaled_identity=True))
    out_r = jax.block_until_ready(fwd_r(x, params))
    ref_r = ref_forward(x, params, rescaled_identity=True)
    assert bool(jnp.allclose(out_r, ref_r, atol=5e-2, rtol=5e-2)), \
        float(jnp.max(jnp.abs(out_r - ref_r)))

    print("KERNEL_OK")
</pallas_src>

<mosaic_0001>
module attributes {stable_mosaic.version = 11 : i64} {
  func.func @_bottleneck_kernel(%arg0: i32, %arg1: memref<16x512xf32, #tpu.memory_space<vmem>>, %arg2: memref<512x128xbf16, #tpu.memory_space<vmem>>, %arg3: memref<1x128xf32, #tpu.memory_space<vmem>>, %arg4: memref<128x128xbf16, #tpu.memory_space<vmem>>, %arg5: memref<1x128xf32, #tpu.memory_space<vmem>>, %arg6: memref<9x128xf32, #tpu.memory_space<vmem>>, %arg7: memref<1x128xf32, #tpu.memory_space<vmem>>, %arg8: memref<128x8xf32, #tpu.memory_space<vmem>>, %arg9: memref<1x8xf32, #tpu.memory_space<vmem>>, %arg10: memref<8x128xf32, #tpu.memory_space<vmem>>, %arg11: memref<1x128xf32, #tpu.memory_space<vmem>>, %arg12: memref<128x512xbf16, #tpu.memory_space<vmem>>, %arg13: memref<1x512xf32, #tpu.memory_space<vmem>>, %arg14: memref<1x512xf32, #tpu.memory_space<vmem>>, %arg15: memref<1x512xf32, #tpu.memory_space<vmem>>, %arg16: memref<512x512xbf16, #tpu.memory_space<vmem>>, %arg17: memref<1x512xf32, #tpu.memory_space<vmem>>, %arg18: memref<16x512xf32, #tpu.memory_space<vmem>>) attributes {dimension_semantics = [#tpu.dimension_semantics<parallel>], iteration_bounds = array<i64: 1>, scalar_prefetch = 0 : i64, scratch_operands = 0 : i64, tpu.core_type = #tpu.core_type<tc>, window_params = [{transform_indices = @transform_0, window_bounds = array<i64: 16, 512>}, {pipeline_mode = #tpu.pipeline_mode<synchronous>, transform_indices = @transform_1, window_bounds = array<i64: 512, 128>}, {pipeline_mode = #tpu.pipeline_mode<synchronous>, transform_indices = @transform_2, window_bounds = array<i64: 1, 128>}, {pipeline_mode = #tpu.pipeline_mode<synchronous>, transform_indices = @transform_3, window_bounds = array<i64: 128, 128>}, {pipeline_mode = #tpu.pipeline_mode<synchronous>, transform_indices = @transform_4, window_bounds = array<i64: 1, 128>}, {pipeline_mode = #tpu.pipeline_mode<synchronous>, transform_indices = @transform_5, window_bounds = array<i64: 9, 128>}, {pipeline_mode = #tpu.pipeline_mode<synchronous>, transform_indices = @transform_6, window_bounds = array<i64: 1, 128>}, {pipeline_mode = #tpu.pipeline_mode<synchronous>, transform_indices = @transform_7, window_bounds = array<i64: 128, 8>}, {pipeline_mode = #tpu.pipeline_mode<synchronous>, transform_indices = @transform_8, window_bounds = array<i64: 1, 8>}, {pipeline_mode = #tpu.pipeline_mode<synchronous>, transform_indices = @transform_9, window_bounds = array<i64: 8, 128>}, {pipeline_mode = #tpu.pipeline_mode<synchronous>, transform_indices = @transform_10, window_bounds = array<i64: 1, 128>}, {pipeline_mode = #tpu.pipeline_mode<synchronous>, transform_indices = @transform_11, window_bounds = array<i64: 128, 512>}, {pipeline_mode = #tpu.pipeline_mode<synchronous>, transform_indices = @transform_12, window_bounds = array<i64: 1, 512>}, {pipeline_mode = #tpu.pipeline_mode<synchronous>, transform_indices = @transform_13, window_bounds = array<i64: 1, 512>}, {pipeline_mode = #tpu.pipeline_mode<synchronous>, transform_indices = @transform_14, window_bounds = array<i64: 1, 512>}, {pipeline_mode = #tpu.pipeline_mode<synchronous>, transform_indices = @transform_15, window_bounds = array<i64: 512, 512>}, {pipeline_mode = #tpu.pipeline_mode<synchronous>, transform_indices = @transform_16, window_bounds = array<i64: 1, 512>}, {transform_indices = @transform_17, window_bounds = array<i64: 16, 512>}]} {
    %c0 = arith.constant 0 : index
    %c0_0 = arith.constant 0 : index
    %0 = vector.load %arg1[%c0, %c0_0] : memref<16x512xf32, #tpu.memory_space<vmem>>, vector<16x512xf32>
    %1 = arith.truncf %0 : vector<16x512xf32> to vector<16x512xbf16>
    %c0_1 = arith.constant 0 : index
    %c0_2 = arith.constant 0 : index
    %2 = vector.load %arg2[%c0_1, %c0_2] : memref<512x128xbf16, #tpu.memory_space<vmem>>, vector<512x128xbf16>
    %cst = arith.constant dense<0.000000e+00> : vector<16x128xf32>
    %3 = tpu.matmul %1, %2, %cst {dimension_numbers = #tpu.dot_dimension_numbers<[1], [0], [0], [1], [0, 0, 1, 1], [], []>} : vector<16x512xbf16>, vector<512x128xbf16>, vector<16x128xf32> -> vector<16x128xf32>
    %c0_3 = arith.constant 0 : index
    %c0_4 = arith.constant 0 : index
    %4 = vector.load %arg3[%c0_3, %c0_4] : memref<1x128xf32, #tpu.memory_space<vmem>>, vector<1x128xf32>
    %5 = vector.broadcast %4 : vector<1x128xf32> to vector<16x128xf32>
    %6 = arith.addf %3, %5 : vector<16x128xf32>
    %7 = tpu.iota {dimensions = array<i32: 0>} : vector<16x1xi32>
    %c8_i32 = arith.constant 8 : i32
    %c0_i32 = arith.constant 0 : i32
    %8 = arith.cmpi eq, %c8_i32, %c0_i32 : i32
    %c1_i32 = arith.constant 1 : i32
    %9 = arith.select %8, %c1_i32, %c8_i32 : i32
    %10 = vector.broadcast %9 : i32 to vector<16x1xi32>
    %11 = arith.remsi %7, %10 : vector<16x1xi32>
    %c0_i32_5 = arith.constant 0 : i32
    %12 = vector.broadcast %c0_i32_5 : i32 to vector<16x1xi32>
    %13 = arith.cmpi ne, %11, %12 : vector<16x1xi32>
    %c0_i32_6 = arith.constant 0 : i32
    %14 = vector.broadcast %c0_i32_6 : i32 to vector<16x1xi32>
    %15 = arith.cmpi slt, %11, %14 : vector<16x1xi32>
    %c0_i32_7 = arith.constant 0 : i32
    %16 = arith.cmpi slt, %9, %c0_i32_7 : i32
    %17 = vector.broadcast %16 : i1 to vector<16x1xi1>
    %18 = vector.broadcast %17 : vector<16x1xi1> to vector<16x1xi1>
    %19 = arith.xori %15, %18 : vector<16x1xi1>
    %20 = arith.andi %19, %13 : vector<16x1xi1>
    %21 = vector.broadcast %9 : i32 to vector<16x1xi32>
    %22 = arith.addi %11, %21 : vector<16x1xi32>
    %23 = arith.select %20, %22, %11 : vector<16x1xi1>, vector<16x1xi32>
    %c0_i32_8 = arith.constant 0 : i32
    %24 = vector.broadcast %c0_i32_8 : i32 to vector<16x1xi32>
    %25 = arith.cmpi ne, %23, %24 : vector<16x1xi32>
    %26 = arith.extui %25 : vector<16x1xi1> to vector<16x1xi32>
    %27 = arith.sitofp %26 : vector<16x1xi32> to vector<16x1xf32>
    %c7_i32 = arith.constant 7 : i32
    %28 = vector.broadcast %c7_i32 : i32 to vector<16x1xi32>
    %29 = arith.cmpi ne, %23, %28 : vector<16x1xi32>
    %30 = arith.extui %29 : vector<16x1xi1> to vector<16x1xi32>
    %31 = arith.sitofp %30 : vector<16x1xi32> to vector<16x1xf32>
    %c0_9 = arith.constant 0 : index
    %c0_10 = arith.constant 0 : index
    %32 = vector.load %arg6[%c0_9, %c0_10] : memref<9x128xf32, #tpu.memory_space<vmem>>, vector<9x128xf32>
    %c0_11 = arith.constant 0 : index
    %c0_12 = arith.constant 0 : index
    %33 = vector.load %arg7[%c0_11, %c0_12] : memref<1x128xf32, #tpu.memory_space<vmem>>, vector<1x128xf32>
    %34 = arith.truncf %6 : vector<16x128xf32> to vector<16x128xbf16>
    %c0_13 = arith.constant 0 : index
    %c0_14 = arith.constant 0 : index
    %35 = vector.load %arg4[%c0_13, %c0_14] : memref<128x128xbf16, #tpu.memory_space<vmem>>, vector<128x128xbf16>
    %cst_15 = arith.constant dense<0.000000e+00> : vector<16x128xf32>
    %36 = tpu.matmul %34, %35, %cst_15 {dimension_numbers = #tpu.dot_dimension_numbers<[1], [0], [0], [1], [0, 0, 1, 1], [], []>} : vector<16x128xbf16>, vector<128x128xbf16>, vector<16x128xf32> -> vector<16x128xf32>
    %c0_16 = arith.constant 0 : index
    %c0_17 = arith.constant 0 : index
    %37 = vector.load %arg5[%c0_16, %c0_17] : memref<1x128xf32, #tpu.memory_space<vmem>>, vector<1x128xf32>
    %38 = vector.broadcast %37 : vector<1x128xf32> to vector<16x128xf32>
    %39 = arith.addf %36, %38 : vector<16x128xf32>
    %c1_i32_18 = arith.constant 1 : i32
    %40 = tpu.dynamic_rotate %39 by %c1_i32_18 dim 0 : vector<16x128xf32>, i32 -> vector<16x128xf32>
    %41 = vector.broadcast %27 : vector<16x1xf32> to vector<16x128xf32>
    %42 = arith.mulf %40, %41 : vector<16x128xf32>
    %c15_i32 = arith.constant 15 : i32
    %43 = tpu.dynamic_rotate %39 by %c15_i32 dim 0 : vector<16x128xf32>, i32 -> vector<16x128xf32>
    %44 = vector.broadcast %31 : vector<16x1xf32> to vector<16x128xf32>
    %45 = arith.mulf %43, %44 : vector<16x128xf32>
    %cst_19 = arith.constant 0.000000e+00 : f32
    %46 = vector.broadcast %cst_19 : f32 to vector<16x128xf32>
    %47 = vector.extract_strided_slice %32 {offsets = [0, 0], sizes = [1, 128], strides = [1, 1]} : vector<9x128xf32> to vector<1x128xf32>
    %c16_i32 = arith.constant 16 : i32
    %48 = tpu.dynamic_rotate %42 by %c16_i32 dim 1 : vector<16x128xf32>, i32 -> vector<16x128xf32>
    %49 = vector.broadcast %47 : vector<1x128xf32> to vector<16x128xf32>
    %50 = arith.mulf %49, %48 : vector<16x128xf32>
    %51 = arith.addf %46, %50 : vector<16x128xf32>
    %52 = vector.extract_strided_slice %32 {offsets = [1, 0], sizes = [1, 128], strides = [1, 1]} : vector<9x128xf32> to vector<1x128xf32>
    %53 = vector.broadcast %52 : vector<1x128xf32> to vector<16x128xf32>
    %54 = arith.mulf %53, %42 : vector<16x128xf32>
    %55 = arith.addf %51, %54 : vector<16x128xf32>
    %56 = vector.extract_strided_slice %32 {offsets = [2, 0], sizes = [1, 128], strides = [1, 1]} : vector<9x128xf32> to vector<1x128xf32>
    %c112_i32 = arith.constant 112 : i32
    %57 = tpu.dynamic_rotate %42 by %c112_i32 dim 1 : vector<16x128xf32>, i32 -> vector<16x128xf32>
    %58 = vector.broadcast %56 : vector<1x128xf32> to vector<16x128xf32>
    %59 = arith.mulf %58, %57 : vector<16x128xf32>
    %60 = arith.addf %55, %59 : vector<16x128xf32>
    %61 = vector.extract_strided_slice %32 {offsets = [3, 0], sizes = [1, 128], strides = [1, 1]} : vector<9x128xf32> to vector<1x128xf32>
    %c16_i32_20 = arith.constant 16 : i32
    %62 = tpu.dynamic_rotate %39 by %c16_i32_20 dim 1 : vector<16x128xf32>, i32 -> vector<16x128xf32>
    %63 = vector.broadcast %61 : vector<1x128xf32> to vector<16x128xf32>
    %64 = arith.mulf %63, %62 : vector<16x128xf32>
    %65 = arith.addf %60, %64 : vector<16x128xf32>
    %66 = vector.extract_strided_slice %32 {offsets = [4, 0], sizes = [1, 128], strides = [1, 1]} : vector<9x128xf32> to vector<1x128xf32>
    %67 = vector.broadcast %66 : vector<1x128xf32> to vector<16x128xf32>
    %68 = arith.mulf %67, %39 : vector<16x128xf32>
    %69 = arith.addf %65, %68 : vector<16x128xf32>
    %70 = vector.extract_strided_slice %32 {offsets = [5, 0], sizes = [1, 128], strides = [1, 1]} : vector<9x128xf32> to vector<1x128xf32>
    %c112_i32_21 = arith.constant 112 : i32
    %71 = tpu.dynamic_rotate %39 by %c112_i32_21 dim 1 : vector<16x128xf32>, i32 -> vector<16x128xf32>
    %72 = vector.broadcast %70 : vector<1x128xf32> to vector<16x128xf32>
    %73 = arith.mulf %72, %71 : vector<16x128xf32>
    %74 = arith.addf %69, %73 : vector<16x128xf32>
    %75 = vector.extract_strided_slice %32 {offsets = [6, 0], sizes = [1, 128], strides = [1, 1]} : vector<9x128xf32> to vector<1x128xf32>
    %c16_i32_22 = arith.constant 16 : i32
    %76 = tpu.dynamic_rotate %45 by %c16_i32_22 dim 1 : vector<16x128xf32>, i32 -> vector<16x128xf32>
    %77 = vector.broadcast %75 : vector<1x128xf32> to vector<16x128xf32>
    %78 = arith.mulf %77, %76 : vector<16x128xf32>
    %79 = arith.addf %74, %78 : vector<16x128xf32>
    %80 = vector.extract_strided_slice %32 {offsets = [7, 0], sizes = [1, 128], strides = [1, 1]} : vector<9x128xf32> to vector<1x128xf32>
    %81 = vector.broadcast %80 : vector<1x128xf32> to vector<16x128xf32>
    %82 = arith.mulf %81, %45 : vector<16x128xf32>
    %83 = arith.addf %79, %82 : vector<16x128xf32>
    %84 = vector.extract_strided_slice %32 {offsets = [8, 0], sizes = [1, 128], strides = [1, 1]} : vector<9x128xf32> to vector<1x128xf32>
    %c112_i32_23 = arith.constant 112 : i32
    %85 = tpu.dynamic_rotate %45 by %c112_i32_23 dim 1 : vector<16x128xf32>, i32 -> vector<16x128xf32>
    %86 = vector.broadcast %84 : vector<1x128xf32> to vector<16x128xf32>
    %87 = arith.mulf %86, %85 : vector<16x128xf32>
    %88 = arith.addf %83, %87 : vector<16x128xf32>
    %89 = vector.broadcast %33 : vector<1x128xf32> to vector<16x128xf32>
    %90 = arith.addf %88, %89 : vector<16x128xf32>
    %cst_24 = arith.constant 0.000000e+00 : f32
    %91 = vector.broadcast %cst_24 : f32 to vector<16x128xf32>
    %92 = arith.maximumf %90, %91 : vector<16x128xf32>
    %93 = arith.truncf %92 : vector<16x128xf32> to vector<16x128xbf16>
    %c0_25 = arith.constant 0 : index
    %c0_26 = arith.constant 0 : index
    %94 = vector.load %arg4[%c0_25, %c0_26] : memref<128x128xbf16, #tpu.memory_space<vmem>>, vector<128x128xbf16>
    %cst_27 = arith.constant dense<0.000000e+00> : vector<16x128xf32>
    %95 = tpu.matmul %93, %94, %cst_27 {dimension_numbers = #tpu.dot_dimension_numbers<[1], [0], [0], [1], [0, 0, 1, 1], [], []>} : vector<16x128xbf16>, vector<128x128xbf16>, vector<16x128xf32> -> vector<16x128xf32>
    %c0_28 = arith.constant 0 : index
    %c0_29 = arith.constant 0 : index
    %96 = vector.load %arg5[%c0_28, %c0_29] : memref<1x128xf32, #tpu.memory_space<vmem>>, vector<1x128xf32>
    %97 = vector.broadcast %96 : vector<1x128xf32> to vector<16x128xf32>
    %98 = arith.addf %95, %97 : vector<16x128xf32>
    %c1_i32_30 = arith.constant 1 : i32
    %99 = tpu.dynamic_rotate %98 by %c1_i32_30 dim 0 : vector<16x128xf32>, i32 -> vector<16x128xf32>
    %100 = vector.broadcast %27 : vector<16x1xf32> to vector<16x128xf32>
    %101 = arith.mulf %99, %100 : vector<16x128xf32>
    %c15_i32_31 = arith.constant 15 : i32
    %102 = tpu.dynamic_rotate %98 by %c15_i32_31 dim 0 : vector<16x128xf32>, i32 -> vector<16x128xf32>
    %103 = vector.broadcast %31 : vector<16x1xf32> to vector<16x128xf32>
    %104 = arith.mulf %102, %103 : vector<16x128xf32>
    %cst_32 = arith.constant 0.000000e+00 : f32
    %105 = vector.broadcast %cst_32 : f32 to vector<16x128xf32>
    %106 = vector.extract_strided_slice %32 {offsets = [0, 0], sizes = [1, 128], strides = [1, 1]} : vector<9x128xf32> to vector<1x128xf32>
    %c16_i32_33 = arith.constant 16 : i32
    %107 = tpu.dynamic_rotate %101 by %c16_i32_33 dim 1 : vector<16x128xf32>, i32 -> vector<16x128xf32>
    %108 = vector.broadcast %106 : vector<1x128xf32> to vector<16x128xf32>
    %109 = arith.mulf %108, %107 : vector<16x128xf32>
    %110 = arith.addf %105, %109 : vector<16x128xf32>
    %111 = vector.extract_strided_slice %32 {offsets = [1, 0], sizes = [1, 128], strides = [1, 1]} : vector<9x128xf32> to vector<1x128xf32>
    %112 = vector.broadcast %111 : vector<1x128xf32> to vector<16x128xf32>
    %113 = arith.mulf %112, %101 : vector<16x128xf32>
    %114 = arith.addf %110, %113 : vector<16x128xf32>
    %115 = vector.extract_strided_slice %32 {offsets = [2, 0], sizes = [1, 128], strides = [1, 1]} : vector<9x128xf32> to vector<1x128xf32>
    %c112_i32_34 = arith.constant 112 : i32
    %116 = tpu.dynamic_rotate %101 by %c112_i32_34 dim 1 : vector<16x128xf32>, i32 -> vector<16x128xf32>
    %117 = vector.broadcast %115 : vector<1x128xf32> to vector<16x128xf32>
    %118 = arith.mulf %117, %116 : vector<16x128xf32>
    %119 = arith.addf %114, %118 : vector<16x128xf32>
    %120 = vector.extract_strided_slice %32 {offsets = [3, 0], sizes = [1, 128], strides = [1, 1]} : vector<9x128xf32> to vector<1x128xf32>
    %c16_i32_35 = arith.constant 16 : i32
    %121 = tpu.dynamic_rotate %98 by %c16_i32_35 dim 1 : vector<16x128xf32>, i32 -> vector<16x128xf32>
    %122 = vector.broadcast %120 : vector<1x128xf32> to vector<16x128xf32>
    %123 = arith.mulf %122, %121 : vector<16x128xf32>
    %124 = arith.addf %119, %123 : vector<16x128xf32>
    %125 = vector.extract_strided_slice %32 {offsets = [4, 0], sizes = [1, 128], strides = [1, 1]} : vector<9x128xf32> to vector<1x128xf32>
    %126 = vector.broadcast %125 : vector<1x128xf32> to vector<16x128xf32>
    %127 = arith.mulf %126, %98 : vector<16x128xf32>
    %128 = arith.addf %124, %127 : vector<16x128xf32>
    %129 = vector.extract_strided_slice %32 {offsets = [5, 0], sizes = [1, 128], strides = [1, 1]} : vector<9x128xf32> to vector<1x128xf32>
    %c112_i32_36 = arith.constant 112 : i32
    %130 = tpu.dynamic_rotate %98 by %c112_i32_36 dim 1 : vector<16x128xf32>, i32 -> vector<16x128xf32>
    %131 = vector.broadcast %129 : vector<1x128xf32> to vector<16x128xf32>
    %132 = arith.mulf %131, %130 : vector<16x128xf32>
    %133 = arith.addf %128, %132 : vector<16x128xf32>
    %134 = vector.extract_strided_slice %32 {offsets = [6, 0], sizes = [1, 128], strides = [1, 1]} : vector<9x128xf32> to vector<1x128xf32>
    %c16_i32_37 = arith.constant 16 : i32
    %135 = tpu.dynamic_rotate %104 by %c16_i32_37 dim 1 : vector<16x128xf32>, i32 -> vector<16x128xf32>
    %136 = vector.broadcast %134 : vector<1x128xf32> to vector<16x128xf32>
    %137 = arith.mulf %136, %135 : vector<16x128xf32>
    %138 = arith.addf %133, %137 : vector<16x128xf32>
    %139 = vector.extract_strided_slice %32 {offsets = [7, 0], sizes = [1, 128], strides = [1, 1]} : vector<9x128xf32> to vector<1x128xf32>
    %140 = vector.broadcast %139 : vector<1x128xf32> to vector<16x128xf32>
    %141 = arith.mulf %140, %104 : vector<16x128xf32>
    %142 = arith.addf %138, %141 : vector<16x128xf32>
    %143 = vector.extract_strided_slice %32 {offsets = [8, 0], sizes = [1, 128], strides = [1, 1]} : vector<9x128xf32> to vector<1x128xf32>
    %c112_i32_38 = arith.constant 112 : i32
    %144 = tpu.dynamic_rotate %104 by %c112_i32_38 dim 1 : vector<16x128xf32>, i32 -> vector<16x128xf32>
    %145 = vector.broadcast %143 : vector<1x128xf32> to vector<16x128xf32>
    %146 = arith.mulf %145, %144 : vector<16x128xf32>
    %147 = arith.addf %142, %146 : vector<16x128xf32>
    %148 = vector.broadcast %33 : vector<1x128xf32> to vector<16x128xf32>
    %149 = arith.addf %147, %148 : vector<16x128xf32>
    %cst_39 = arith.constant 0.000000e+00 : f32
    %150 = vector.broadcast %cst_39 : f32 to vector<16x128xf32>
    %151 = arith.maximumf %149, %150 : vector<16x128xf32>
    %152 = arith.truncf %151 : vector<16x128xf32> to vector<16x128xbf16>
    %c0_40 = arith.constant 0 : index
    %c0_41 = arith.constant 0 : index
    %153 = vector.load %arg4[%c0_40, %c0_41] : memref<128x128xbf16, #tpu.memory_space<vmem>>, vector<128x128xbf16>
    %cst_42 = arith.constant dense<0.000000e+00> : vector<16x128xf32>
    %154 = tpu.matmul %152, %153, %cst_42 {dimension_numbers = #tpu.dot_dimension_numbers<[1], [0], [0], [1], [0, 0, 1, 1], [], []>} : vector<16x128xbf16>, vector<128x128xbf16>, vector<16x128xf32> -> vector<16x128xf32>
    %c0_43 = arith.constant 0 : index
    %c0_44 = arith.constant 0 : index
    %155 = vector.load %arg5[%c0_43, %c0_44] : memref<1x128xf32, #tpu.memory_space<vmem>>, vector<1x128xf32>
    %156 = vector.broadcast %155 : vector<1x128xf32> to vector<16x128xf32>
    %157 = arith.addf %154, %156 : vector<16x128xf32>
    %c1_i32_45 = arith.constant 1 : i32
    %158 = tpu.dynamic_rotate %157 by %c1_i32_45 dim 0 : vector<16x128xf32>, i32 -> vector<16x128xf32>
    %159 = vector.broadcast %27 : vector<16x1xf32> to vector<16x128xf32>
    %160 = arith.mulf %158, %159 : vector<16x128xf32>
    %c15_i32_46 = arith.constant 15 : i32
    %161 = tpu.dynamic_rotate %157 by %c15_i32_46 dim 0 : vector<16x128xf32>, i32 -> vector<16x128xf32>
    %162 = vector.broadcast %31 : vector<16x1xf32> to vector<16x128xf32>
    %163 = arith.mulf %161, %162 : vector<16x128xf32>
    %cst_47 = arith.constant 0.000000e+00 : f32
    %164 = vector.broadcast %cst_47 : f32 to vector<16x128xf32>
    %165 = vector.extract_strided_slice %32 {offsets = [0, 0], sizes = [1, 128], strides = [1, 1]} : vector<9x128xf32> to vector<1x128xf32>
    %c16_i32_48 = arith.constant 16 : i32
    %166 = tpu.dynamic_rotate %160 by %c16_i32_48 dim 1 : vector<16x128xf32>, i32 -> vector<16x128xf32>
    %167 = vector.broadcast %165 : vector<1x128xf32> to vector<16x128xf32>
    %168 = arith.mulf %167, %166 : vector<16x128xf32>
    %169 = arith.addf %164, %168 : vector<16x128xf32>
    %170 = vector.extract_strided_slice %32 {offsets = [1, 0], sizes = [1, 128], strides = [1, 1]} : vector<9x128xf32> to vector<1x128xf32>
    %171 = vector.broadcast %170 : vector<1x128xf32> to vector<16x128xf32>
    %172 = arith.mulf %171, %160 : vector<16x128xf32>
    %173 = arith.addf %169, %172 : vector<16x128xf32>
    %174 = vector.extract_strided_slice %32 {offsets = [2, 0], sizes = [1, 128], strides = [1, 1]} : vector<9x128xf32> to vector<1x128xf32>
    %c112_i32_49 = arith.constant 112 : i32
    %175 = tpu.dynamic_rotate %160 by %c112_i32_49 dim 1 : vector<16x128xf32>, i32 -> vector<16x128xf32>
    %176 = vector.broadcast %174 : vector<1x128xf32> to vector<16x128xf32>
    %177 = arith.mulf %176, %175 : vector<16x128xf32>
    %178 = arith.addf %173, %177 : vector<16x128xf32>
    %179 = vector.extract_strided_slice %32 {offsets = [3, 0], sizes = [1, 128], strides = [1, 1]} : vector<9x128xf32> to vector<1x128xf32>
    %c16_i32_50 = arith.constant 16 : i32
    %180 = tpu.dynamic_rotate %157 by %c16_i32_50 dim 1 : vector<16x128xf32>, i32 -> vector<16x128xf32>
    %181 = vector.broadcast %179 : vector<1x128xf32> to vector<16x128xf32>
    %182 = arith.mulf %181, %180 : vector<16x128xf32>
    %183 = arith.addf %178, %182 : vector<16x128xf32>
    %184 = vector.extract_strided_slice %32 {offsets = [4, 0], sizes = [1, 128], strides = [1, 1]} : vector<9x128xf32> to vector<1x128xf32>
    %185 = vector.broadcast %184 : vector<1x128xf32> to vector<16x128xf32>
    %186 = arith.mulf %185, %157 : vector<16x128xf32>
    %187 = arith.addf %183, %186 : vector<16x128xf32>
    %188 = vector.extract_strided_slice %32 {offsets = [5, 0], sizes = [1, 128], strides = [1, 1]} : vector<9x128xf32> to vector<1x128xf32>
    %c112_i32_51 = arith.constant 112 : i32
    %189 = tpu.dynamic_rotate %157 by %c112_i32_51 dim 1 : vector<16x128xf32>, i32 -> vector<16x128xf32>
    %190 = vector.broadcast %188 : vector<1x128xf32> to vector<16x128xf32>
    %191 = arith.mulf %190, %189 : vector<16x128xf32>
    %192 = arith.addf %187, %191 : vector<16x128xf32>
    %193 = vector.extract_strided_slice %32 {offsets = [6, 0], sizes = [1, 128], strides = [1, 1]} : vector<9x128xf32> to vector<1x128xf32>
    %c16_i32_52 = arith.constant 16 : i32
    %194 = tpu.dynamic_rotate %163 by %c16_i32_52 dim 1 : vector<16x128xf32>, i32 -> vector<16x128xf32>
    %195 = vector.broadcast %193 : vector<1x128xf32> to vector<16x128xf32>
    %196 = arith.mulf %195, %194 : vector<16x128xf32>
    %197 = arith.addf %192, %196 : vector<16x128xf32>
    %198 = vector.extract_strided_slice %32 {offsets = [7, 0], sizes = [1, 128], strides = [1, 1]} : vector<9x128xf32> to vector<1x128xf32>
    %199 = vector.broadcast %198 : vector<1x128xf32> to vector<16x128xf32>
    %200 = arith.mulf %199, %163 : vector<16x128xf32>
    %201 = arith.addf %197, %200 : vector<16x128xf32>
    %202 = vector.extract_strided_slice %32 {offsets = [8, 0], sizes = [1, 128], strides = [1, 1]} : vector<9x128xf32> to vector<1x128xf32>
    %c112_i32_53 = arith.constant 112 : i32
    %203 = tpu.dynamic_rotate %163 by %c112_i32_53 dim 1 : vector<16x128xf32>, i32 -> vector<16x128xf32>
    %204 = vector.broadcast %202 : vector<1x128xf32> to vector<16x128xf32>
    %205 = arith.mulf %204, %203 : vector<16x128xf32>
    %206 = arith.addf %201, %205 : vector<16x128xf32>
    %207 = vector.broadcast %33 : vector<1x128xf32> to vector<16x128xf32>
    %208 = arith.addf %206, %207 : vector<16x128xf32>
    %cst_54 = arith.constant 0.000000e+00 : f32
    %209 = vector.broadcast %cst_54 : f32 to vector<16x128xf32>
    %210 = arith.maximumf %208, %209 : vector<16x128xf32>
    %211 = arith.truncf %210 : vector<16x128xf32> to vector<16x128xbf16>
    %c0_55 = arith.constant 0 : index
    %c0_56 = arith.constant 0 : index
    %212 = vector.load %arg4[%c0_55, %c0_56] : memref<128x128xbf16, #tpu.memory_space<vmem>>, vector<128x128xbf16>
    %cst_57 = arith.constant dense<0.000000e+00> : vector<16x128xf32>
    %213 = tpu.matmul %211, %212, %cst_57 {dimension_numbers = #tpu.dot_dimension_numbers<[1], [0], [0], [1], [0, 0, 1, 1], [], []>} : vector<16x128xbf16>, vector<128x128xbf16>, vector<16x128xf32> -> vector<16x128xf32>
    %c0_58 = arith.constant 0 : index
    %c0_59 = arith.constant 0 : index
    %214 = vector.load %arg5[%c0_58, %c0_59] : memref<1x128xf32, #tpu.memory_space<vmem>>, vector<1x128xf32>
    %215 = vector.broadcast %214 : vector<1x128xf32> to vector<16x128xf32>
    %216 = arith.addf %213, %215 : vector<16x128xf32>
    %c1_i32_60 = arith.constant 1 : i32
    %217 = tpu.dynamic_rotate %216 by %c1_i32_60 dim 0 : vector<16x128xf32>, i32 -> vector<16x128xf32>
    %218 = vector.broadcast %27 : vector<16x1xf32> to vector<16x128xf32>
    %219 = arith.mulf %217, %218 : vector<16x128xf32>
    %c15_i32_61 = arith.constant 15 : i32
    %220 = tpu.dynamic_rotate %216 by %c15_i32_61 dim 0 : vector<16x128xf32>, i32 -> vector<16x128xf32>
    %221 = vector.broadcast %31 : vector<16x1xf32> to vector<16x128xf32>
    %222 = arith.mulf %220, %221 : vector<16x128xf32>
    %cst_62 = arith.constant 0.000000e+00 : f32
    %223 = vector.broadcast %cst_62 : f32 to vector<16x128xf32>
    %224 = vector.extract_strided_slice %32 {offsets = [0, 0], sizes = [1, 128], strides = [1, 1]} : vector<9x128xf32> to vector<1x128xf32>
    %c16_i32_63 = arith.constant 16 : i32
    %225 = tpu.dynamic_rotate %219 by %c16_i32_63 dim 1 : vector<16x128xf32>, i32 -> vector<16x128xf32>
    %226 = vector.broadcast %224 : vector<1x128xf32> to vector<16x128xf32>
    %227 = arith.mulf %226, %225 : vector<16x128xf32>
    %228 = arith.addf %223, %227 : vector<16x128xf32>
    %229 = vector.extract_strided_slice %32 {offsets = [1, 0], sizes = [1, 128], strides = [1, 1]} : vector<9x128xf32> to vector<1x128xf32>
    %230 = vector.broadcast %229 : vector<1x128xf32> to vector<16x128xf32>
    %231 = arith.mulf %230, %219 : vector<16x128xf32>
    %232 = arith.addf %228, %231 : vector<16x128xf32>
    %233 = vector.extract_strided_slice %32 {offsets = [2, 0], sizes = [1, 128], strides = [1, 1]} : vector<9x128xf32> to vector<1x128xf32>
    %c112_i32_64 = arith.constant 112 : i32
    %234 = tpu.dynamic_rotate %219 by %c112_i32_64 dim 1 : vector<16x128xf32>, i32 -> vector<16x128xf32>
    %235 = vector.broadcast %233 : vector<1x128xf32> to vector<16x128xf32>
    %236 = arith.mulf %235, %234 : vector<16x128xf32>
    %237 = arith.addf %232, %236 : vector<16x128xf32>
    %238 = vector.extract_strided_slice %32 {offsets = [3, 0], sizes = [1, 128], strides = [1, 1]} : vector<9x128xf32> to vector<1x128xf32>
    %c16_i32_65 = arith.constant 16 : i32
    %239 = tpu.dynamic_rotate %216 by %c16_i32_65 dim 1 : vector<16x128xf32>, i32 -> vector<16x128xf32>
    %240 = vector.broadcast %238 : vector<1x128xf32> to vector<16x128xf32>
    %241 = arith.mulf %240, %239 : vector<16x128xf32>
    %242 = arith.addf %237, %241 : vector<16x128xf32>
    %243 = vector.extract_strided_slice %32 {offsets = [4, 0], sizes = [1, 128], strides = [1, 1]} : vector<9x128xf32> to vector<1x128xf32>
    %244 = vector.broadcast %243 : vector<1x128xf32> to vector<16x128xf32>
    %245 = arith.mulf %244, %216 : vector<16x128xf32>
    %246 = arith.addf %242, %245 : vector<16x128xf32>
    %247 = vector.extract_strided_slice %32 {offsets = [5, 0], sizes = [1, 128], strides = [1, 1]} : vector<9x128xf32> to vector<1x128xf32>
    %c112_i32_66 = arith.constant 112 : i32
    %248 = tpu.dynamic_rotate %216 by %c112_i32_66 dim 1 : vector<16x128xf32>, i32 -> vector<16x128xf32>
    %249 = vector.broadcast %247 : vector<1x128xf32> to vector<16x128xf32>
    %250 = arith.mulf %249, %248 : vector<16x128xf32>
    %251 = arith.addf %246, %250 : vector<16x128xf32>
    %252 = vector.extract_strided_slice %32 {offsets = [6, 0], sizes = [1, 128], strides = [1, 1]} : vector<9x128xf32> to vector<1x128xf32>
    %c16_i32_67 = arith.constant 16 : i32
    %253 = tpu.dynamic_rotate %222 by %c16_i32_67 dim 1 : vector<16x128xf32>, i32 -> vector<16x128xf32>
    %254 = vector.broadcast %252 : vector<1x128xf32> to vector<16x128xf32>
    %255 = arith.mulf %254, %253 : vector<16x128xf32>
    %256 = arith.addf %251, %255 : vector<16x128xf32>
    %257 = vector.extract_strided_slice %32 {offsets = [7, 0], sizes = [1, 128], strides = [1, 1]} : vector<9x128xf32> to vector<1x128xf32>
    %258 = vector.broadcast %257 : vector<1x128xf32> to vector<16x128xf32>
    %259 = arith.mulf %258, %222 : vector<16x128xf32>
    %260 = arith.addf %256, %259 : vector<16x128xf32>
    %261 = vector.extract_strided_slice %32 {offsets = [8, 0], sizes = [1, 128], strides = [1, 1]} : vector<9x128xf32> to vector<1x128xf32>
    %c112_i32_68 = arith.constant 112 : i32
    %262 = tpu.dynamic_rotate %222 by %c112_i32_68 dim 1 : vector<16x128xf32>, i32 -> vector<16x128xf32>
    %263 = vector.broadcast %261 : vector<1x128xf32> to vector<16x128xf32>
    %264 = arith.mulf %263, %262 : vector<16x128xf32>
    %265 = arith.addf %260, %264 : vector<16x128xf32>
    %266 = vector.broadcast %33 : vector<1x128xf32> to vector<16x128xf32>
    %267 = arith.addf %265, %266 : vector<16x128xf32>
    %cst_69 = arith.constant 0.000000e+00 : f32
    %268 = vector.broadcast %cst_69 : f32 to vector<16x128xf32>
    %269 = arith.maximumf %267, %268 : vector<16x128xf32>
    %c0_70 = arith.constant 0 : index
    %c0_71 = arith.constant 0 : index
    %270 = vector.load %arg8[%c0_70, %c0_71] : memref<128x8xf32, #tpu.memory_space<vmem>>, vector<128x8xf32>
    %c0_72 = arith.constant 0 : index
    %c0_73 = arith.constant 0 : index
    %271 = vector.load %arg9[%c0_72, %c0_73] : memref<1x8xf32, #tpu.memory_space<vmem>>, vector<1x8xf32>
    %c0_74 = arith.constant 0 : index
    %c0_75 = arith.constant 0 : index
    %272 = vector.load %arg10[%c0_74, %c0_75] : memref<8x128xf32, #tpu.memory_space<vmem>>, vector<8x128xf32>
    %c0_76 = arith.constant 0 : index
    %c0_77 = arith.constant 0 : index
    %273 = vector.load %arg11[%c0_76, %c0_77] : memref<1x128xf32, #tpu.memory_space<vmem>>, vector<1x128xf32>
    %274 = vector.shape_cast %92 : vector<16x128xf32> to vector<2x8x128xf32>
    %cst_78 = arith.constant dense<0.000000e+00> : vector<2x128xf32>
    %275 = vector.multi_reduction <add>, %274, %cst_78 [1] : vector<2x8x128xf32> to vector<2x128xf32>
    %cst_79 = arith.constant dense<0.000000e+00> : vector<2x8xf32>
    %276 = tpu.matmul %275, %270, %cst_79 {dimension_numbers = #tpu.dot_dimension_numbers<[1], [0], [0], [1], [0, 0, 1, 1], [], []>} : vector<2x128xf32>, vector<128x8xf32>, vector<2x8xf32> -> vector<2x8xf32>
    %277 = vector.broadcast %271 : vector<1x8xf32> to vector<2x8xf32>
    %278 = arith.addf %276, %277 : vector<2x8xf32>
    %cst_80 = arith.constant 0.000000e+00 : f32
    %279 = vector.broadcast %cst_80 : f32 to vector<2x8xf32>
    %280 = arith.maximumf %278, %279 : vector<2x8xf32>
    %cst_81 = arith.constant dense<0.000000e+00> : vector<2x128xf32>
    %281 = tpu.matmul %280, %272, %cst_81 {dimension_numbers = #tpu.dot_dimension_numbers<[1], [0], [0], [1], [0, 0, 1, 1], [], []>} : vector<2x8xf32>, vector<8x128xf32>, vector<2x128xf32> -> vector<2x128xf32>
    %282 = vector.broadcast %273 : vector<1x128xf32> to vector<2x128xf32>
    %283 = arith.addf %281, %282 : vector<2x128xf32>
    %284 = arith.negf %283 : vector<2x128xf32>
    %285 = math.exp %284 : vector<2x128xf32>
    %cst_82 = arith.constant 1.000000e+00 : f32
    %286 = vector.broadcast %cst_82 : f32 to vector<2x128xf32>
    %287 = arith.addf %286, %285 : vector<2x128xf32>
    %288 = arith.divf %286, %287 : vector<2x128xf32>
    %289 = vector.shape_cast %288 : vector<2x128xf32> to vector<2x1x128xf32>
    %290 = vector.broadcast %289 : vector<2x1x128xf32> to vector<2x8x128xf32>
    %291 = arith.mulf %274, %290 : vector<2x8x128xf32>
    %292 = vector.shape_cast %291 : vector<2x8x128xf32> to vector<16x128xf32>
    %293 = vector.shape_cast %151 : vector<16x128xf32> to vector<2x8x128xf32>
    %cst_83 = arith.constant dense<0.000000e+00> : vector<2x128xf32>
    %294 = vector.multi_reduction <add>, %293, %cst_83 [1] : vector<2x8x128xf32> to vector<2x128xf32>
    %cst_84 = arith.constant dense<0.000000e+00> : vector<2x8xf32>
    %295 = tpu.matmul %294, %270, %cst_84 {dimension_numbers = #tpu.dot_dimension_numbers<[1], [0], [0], [1], [0, 0, 1, 1], [], []>} : vector<2x128xf32>, vector<128x8xf32>, vector<2x8xf32> -> vector<2x8xf32>
    %296 = vector.broadcast %271 : vector<1x8xf32> to vector<2x8xf32>
    %297 = arith.addf %295, %296 : vector<2x8xf32>
    %cst_85 = arith.constant 0.000000e+00 : f32
    %298 = vector.broadcast %cst_85 : f32 to vector<2x8xf32>
    %299 = arith.maximumf %297, %298 : vector<2x8xf32>
    %cst_86 = arith.constant dense<0.000000e+00> : vector<2x128xf32>
    %300 = tpu.matmul %299, %272, %cst_86 {dimension_numbers = #tpu.dot_dimension_numbers<[1], [0], [0], [1], [0, 0, 1, 1], [], []>} : vector<2x8xf32>, vector<8x128xf32>, vector<2x128xf32> -> vector<2x128xf32>
    %301 = vector.broadcast %273 : vector<1x128xf32> to vector<2x128xf32>
    %302 = arith.addf %300, %301 : vector<2x128xf32>
    %303 = arith.negf %302 : vector<2x128xf32>
    %304 = math.exp %303 : vector<2x128xf32>
    %cst_87 = arith.constant 1.000000e+00 : f32
    %305 = vector.broadcast %cst_87 : f32 to vector<2x128xf32>
    %306 = arith.addf %305, %304 : vector<2x128xf32>
    %307 = arith.divf %305, %306 : vector<2x128xf32>
    %308 = vector.shape_cast %307 : vector<2x128xf32> to vector<2x1x128xf32>
    %309 = vector.broadcast %308 : vector<2x1x128xf32> to vector<2x8x128xf32>
    %310 = arith.mulf %293, %309 : vector<2x8x128xf32>
    %311 = vector.shape_cast %310 : vector<2x8x128xf32> to vector<16x128xf32>
    %312 = arith.addf %292, %311 : vector<16x128xf32>
    %313 = vector.shape_cast %210 : vector<16x128xf32> to vector<2x8x128xf32>
    %cst_88 = arith.constant dense<0.000000e+00> : vector<2x128xf32>
    %314 = vector.multi_reduction <add>, %313, %cst_88 [1] : vector<2x8x128xf32> to vector<2x128xf32>
    %cst_89 = arith.constant dense<0.000000e+00> : vector<2x8xf32>
    %315 = tpu.matmul %314, %270, %cst_89 {dimension_numbers = #tpu.dot_dimension_numbers<[1], [0], [0], [1], [0, 0, 1, 1], [], []>} : vector<2x128xf32>, vector<128x8xf32>, vector<2x8xf32> -> vector<2x8xf32>
    %316 = vector.broadcast %271 : vector<1x8xf32> to vector<2x8xf32>
    %317 = arith.addf %315, %316 : vector<2x8xf32>
    %cst_90 = arith.constant 0.000000e+00 : f32
    %318 = vector.broadcast %cst_90 : f32 to vector<2x8xf32>
    %319 = arith.maximumf %317, %318 : vector<2x8xf32>
    %cst_91 = arith.constant dense<0.000000e+00> : vector<2x128xf32>
    %320 = tpu.matmul %319, %272, %cst_91 {dimension_numbers = #tpu.dot_dimension_numbers<[1], [0], [0], [1], [0, 0, 1, 1], [], []>} : vector<2x8xf32>, vector<8x128xf32>, vector<2x128xf32> -> vector<2x128xf32>
    %321 = vector.broadcast %273 : vector<1x128xf32> to vector<2x128xf32>
    %322 = arith.addf %320, %321 : vector<2x128xf32>
    %323 = arith.negf %322 : vector<2x128xf32>
    %324 = math.exp %323 : vector<2x128xf32>
    %cst_92 = arith.constant 1.000000e+00 : f32
    %325 = vector.broadcast %cst_92 : f32 to vector<2x128xf32>
    %326 = arith.addf %325, %324 : vector<2x128xf32>
    %327 = arith.divf %325, %326 : vector<2x128xf32>
    %328 = vector.shape_cast %327 : vector<2x128xf32> to vector<2x1x128xf32>
    %329 = vector.broadcast %328 : vector<2x1x128xf32> to vector<2x8x128xf32>
    %330 = arith.mulf %313, %329 : vector<2x8x128xf32>
    %331 = vector.shape_cast %330 : vector<2x8x128xf32> to vector<16x128xf32>
    %332 = arith.addf %312, %331 : vector<16x128xf32>
    %333 = vector.shape_cast %269 : vector<16x128xf32> to vector<2x8x128xf32>
    %cst_93 = arith.constant dense<0.000000e+00> : vector<2x128xf32>
    %334 = vector.multi_reduction <add>, %333, %cst_93 [1] : vector<2x8x128xf32> to vector<2x128xf32>
    %cst_94 = arith.constant dense<0.000000e+00> : vector<2x8xf32>
    %335 = tpu.matmul %334, %270, %cst_94 {dimension_numbers = #tpu.dot_dimension_numbers<[1], [0], [0], [1], [0, 0, 1, 1], [], []>} : vector<2x128xf32>, vector<128x8xf32>, vector<2x8xf32> -> vector<2x8xf32>
    %336 = vector.broadcast %271 : vector<1x8xf32> to vector<2x8xf32>
    %337 = arith.addf %335, %336 : vector<2x8xf32>
    %cst_95 = arith.constant 0.000000e+00 : f32
    %338 = vector.broadcast %cst_95 : f32 to vector<2x8xf32>
    %339 = arith.maximumf %337, %338 : vector<2x8xf32>
    %cst_96 = arith.constant dense<0.000000e+00> : vector<2x128xf32>
    %340 = tpu.matmul %339, %272, %cst_96 {dimension_numbers = #tpu.dot_dimension_numbers<[1], [0], [0], [1], [0, 0, 1, 1], [], []>} : vector<2x8xf32>, vector<8x128xf32>, vector<2x128xf32> -> vector<2x128xf32>
    %341 = vector.broadcast %273 : vector<1x128xf32> to vector<2x128xf32>
    %342 = arith.addf %340, %341 : vector<2x128xf32>
    %343 = arith.negf %342 : vector<2x128xf32>
    %344 = math.exp %343 : vector<2x128xf32>
    %cst_97 = arith.constant 1.000000e+00 : f32
    %345 = vector.broadcast %cst_97 : f32 to vector<2x128xf32>
    %346 = arith.addf %345, %344 : vector<2x128xf32>
    %347 = arith.divf %345, %346 : vector<2x128xf32>
    %348 = vector.shape_cast %347 : vector<2x128xf32> to vector<2x1x128xf32>
    %349 = vector.broadcast %348 : vector<2x1x128xf32> to vector<2x8x128xf32>
    %350 = arith.mulf %333, %349 : vector<2x8x128xf32>
    %351 = vector.shape_cast %350 : vector<2x8x128xf32> to vector<16x128xf32>
    %352 = arith.addf %332, %351 : vector<16x128xf32>
    %353 = arith.truncf %352 : vector<16x128xf32> to vector<16x128xbf16>
    %c0_98 = arith.constant 0 : index
    %c0_99 = arith.constant 0 : index
    %354 = vector.load %arg12[%c0_98, %c0_99] : memref<128x512xbf16, #tpu.memory_space<vmem>>, vector<128x512xbf16>
    %cst_100 = arith.constant dense<0.000000e+00> : vector<16x512xf32>
    %355 = tpu.matmul %353, %354, %cst_100 {dimension_numbers = #tpu.dot_dimension_numbers<[1], [0], [0], [1], [0, 0, 1, 1], [], []>} : vector<16x128xbf16>, vector<128x512xbf16>, vector<16x512xf32> -> vector<16x512xf32>
    %c0_101 = arith.constant 0 : index
    %c0_102 = arith.constant 0 : index
    %356 = vector.load %arg13[%c0_101, %c0_102] : memref<1x512xf32, #tpu.memory_space<vmem>>, vector<1x512xf32>
    %357 = vector.broadcast %356 : vector<1x512xf32> to vector<16x512xf32>
    %358 = arith.addf %355, %357 : vector<16x512xf32>
    %359 = arith.addf %0, %358 : vector<16x512xf32>
    %c0_103 = arith.constant 0 : index
    %c0_104 = arith.constant 0 : index
    %360 = vector.load %arg14[%c0_103, %c0_104] : memref<1x512xf32, #tpu.memory_space<vmem>>, vector<1x512xf32>
    %361 = vector.broadcast %360 : vector<1x512xf32> to vector<16x512xf32>
    %362 = arith.mulf %359, %361 : vector<16x512xf32>
    %c0_105 = arith.constant 0 : index
    %c0_106 = arith.constant 0 : index
    %363 = vector.load %arg15[%c0_105, %c0_106] : memref<1x512xf32, #tpu.memory_space<vmem>>, vector<1x512xf32>
    %364 = vector.broadcast %363 : vector<1x512xf32> to vector<16x512xf32>
    %365 = arith.addf %362, %364 : vector<16x512xf32>
    %cst_107 = arith.constant 0.000000e+00 : f32
    %366 = vector.broadcast %cst_107 : f32 to vector<16x512xf32>
    %367 = arith.maximumf %365, %366 : vector<16x512xf32>
    %c0_108 = arith.constant 0 : index
    %c0_109 = arith.constant 0 : index
    %368 = vector.load %arg18[%c0_108, %c0_109] : memref<16x512xf32, #tpu.memory_space<vmem>>, vector<16x512xf32>
    tpu.vector_store %arg18[%c0_108, %c0_109], %367 {strides = array<i32>} : memref<16x512xf32, #tpu.memory_space<vmem>>, vector<16x512xf32>,
    return
  }
  func.func @transform_0(%arg0: i32) -> (i32, i32) {
    %c0_i32 = arith.constant 0 : i32
    %c0_i32_0 = arith.constant 0 : i32
    return %arg0, %c0_i32 : i32, i32
  }
  func.func @transform_1(%arg0: i32) -> (i32, i32) {
    %c0_i32 = arith.constant 0 : i32
    %c0_i32_0 = arith.constant 0 : i32
    %c0_i32_1 = arith.constant 0 : i32
    return %c0_i32, %c0_i32_0 : i32, i32
  }
  func.func @transform_2(%arg0: i32) -> (i32, i32) {
    %c0_i32 = arith.constant 0 : i32
    %c0_i32_0 = arith.constant 0 : i32
    %c0_i32_1 = arith.constant 0 : i32
    return %c0_i32, %c0_i32_0 : i32, i32
  }
  func.func @transform_3(%arg0: i32) -> (i32, i32) {
    %c0_i32 = arith.constant 0 : i32
    %c0_i32_0 = arith.constant 0 : i32
    %c0_i32_1 = arith.constant 0 : i32
    return %c0_i32, %c0_i32_0 : i32, i32
  }
  func.func @transform_4(%arg0: i32) -> (i32, i32) {
    %c0_i32 = arith.constant 0 : i32
    %c0_i32_0 = arith.constant 0 : i32
    %c0_i32_1 = arith.constant 0 : i32
    return %c0_i32, %c0_i32_0 : i32, i32
  }
  func.func @transform_5(%arg0: i32) -> (i32, i32) {
    %c0_i32 = arith.constant 0 : i32
    %c0_i32_0 = arith.constant 0 : i32
    %c0_i32_1 = arith.constant 0 : i32
    return %c0_i32, %c0_i32_0 : i32, i32
  }
  func.func @transform_6(%arg0: i32) -> (i32, i32) {
    %c0_i32 = arith.constant 0 : i32
    %c0_i32_0 = arith.constant 0 : i32
    %c0_i32_1 = arith.constant 0 : i32
    return %c0_i32, %c0_i32_0 : i32, i32
  }
  func.func @transform_7(%arg0: i32) -> (i32, i32) {
    %c0_i32 = arith.constant 0 : i32
    %c0_i32_0 = arith.constant 0 : i32
    %c0_i32_1 = arith.constant 0 : i32
    return %c0_i32, %c0_i32_0 : i32, i32
  }
  func.func @transform_8(%arg0: i32) -> (i32, i32) {
    %c0_i32 = arith.constant 0 : i32
    %c0_i32_0 = arith.constant 0 : i32
    %c0_i32_1 = arith.constant 0 : i32
    return %c0_i32, %c0_i32_0 : i32, i32
  }
  func.func @transform_9(%arg0: i32) -> (i32, i32) {
    %c0_i32 = arith.constant 0 : i32
    %c0_i32_0 = arith.constant 0 : i32
    %c0_i32_1 = arith.constant 0 : i32
    return %c0_i32, %c0_i32_0 : i32, i32
  }
  func.func @transform_10(%arg0: i32) -> (i32, i32) {
    %c0_i32 = arith.constant 0 : i32
    %c0_i32_0 = arith.constant 0 : i32
    %c0_i32_1 = arith.constant 0 : i32
    return %c0_i32, %c0_i32_0 : i32, i32
  }
  func.func @transform_11(%arg0: i32) -> (i32, i32) {
    %c0_i32 = arith.constant 0 : i32
    %c0_i32_0 = arith.constant 0 : i32
    %c0_i32_1 = arith.constant 0 : i32
    return %c0_i32, %c0_i32_0 : i32, i32
  }
  func.func @transform_12(%arg0: i32) -> (i32, i32) {
    %c0_i32 = arith.constant 0 : i32
    %c0_i32_0 = arith.constant 0 : i32
    %c0_i32_1 = arith.constant 0 : i32
    return %c0_i32, %c0_i32_0 : i32, i32
  }
  func.func @transform_13(%arg0: i32) -> (i32, i32) {
    %c0_i32 = arith.constant 0 : i32
    %c0_i32_0 = arith.constant 0 : i32
    %c0_i32_1 = arith.constant 0 : i32
    return %c0_i32, %c0_i32_0 : i32, i32
  }
  func.func @transform_14(%arg0: i32) -> (i32, i32) {
    %c0_i32 = arith.constant 0 : i32
    %c0_i32_0 = arith.constant 0 : i32
    %c0_i32_1 = arith.constant 0 : i32
    return %c0_i32, %c0_i32_0 : i32, i32
  }
  func.func @transform_15(%arg0: i32) -> (i32, i32) {
    %c0_i32 = arith.constant 0 : i32
    %c0_i32_0 = arith.constant 0 : i32
    %c0_i32_1 = arith.constant 0 : i32
    return %c0_i32, %c0_i32_0 : i32, i32
  }
  func.func @transform_16(%arg0: i32) -> (i32, i32) {
    %c0_i32 = arith.constant 0 : i32
    %c0_i32_0 = arith.constant 0 : i32
    %c0_i32_1 = arith.constant 0 : i32
    return %c0_i32, %c0_i32_0 : i32, i32
  }
  func.func @transform_17(%arg0: i32) -> (i32, i32) {
    %c0_i32 = arith.constant 0 : i32
    %c0_i32_0 = arith.constant 0 : i32
    return %arg0, %c0_i32 : i32, i32
  }
}

</mosaic_0001>

<llo_original>
// kernel: tile.59
$region0: #{tile.59}
  %s0 = inlined_call_operand.vmem [shape: f32[9,8,16], index: 0, kind: input, shape index: {}]
  %s1 = inlined_call_operand.vmem [shape: f32[9,128], index: 1, kind: output, shape index: {}]
  %v2 = vld [vmem:[%s0] ss:$8 sm:$0xf]
  %v3 = vld [vmem:[%s0] ss:$8 sm:$0xf0]
  %vm4 = vcmask 1047556
  %v5 = vsel %vm4, %v3, %v2
  %vm6 = vcmask 130048
  %7 = vst.msk [vmem:[%s1] sm:$0xff] %vm6, %v5
  %s8 = scalar_lea.vmem %s0, 64
  %v9 = vld [vmem:[%s8] sm:$0x1]
  %vm10 = vcmask 130048
  %s11 = scalar_lea.vmem %s1, 8
  %12 = vst.msk [vmem:[%s11] sm:$0x1] %vm10, %v9
  %s13 = scalar_lea.vmem %s0, 7
  %v14 = vld [vmem:[%s13] ss:$8 sm:$0xf]
  %s15 = scalar_lea.vmem %s0, 7
  %v16 = vld [vmem:[%s15] ss:$8 sm:$0xf0]
  %vm17 = vcmask 1047556
  %v18 = vsel %vm17, %v16, %v14
  %19 = vrot.lane.b32.xlu0 %v18, 112
  %v20 = vpop.permute.xlu0 %19
  %vm21 = vcmask 1048448
  %22 = vst.msk [vmem:[%s1] sm:$0xff] %vm21, %v20
  %s23 = scalar_lea.vmem %s0, 71
  %v24 = vld [vmem:[%s23] sm:$0x1]
  %25 = vrot.lane.b32.xlu0 %v24, 112
  %v26 = vpop.permute.xlu0 %25
  %vm27 = vcmask 1048448
  %s28 = scalar_lea.vmem %s1, 8
  %29 = vst.msk [vmem:[%s28] sm:$0x1] %vm27, %v26
  %s30 = scalar_lea.vmem %s0, 6
  %v31 = vld [vmem:[%s30] ss:$8 sm:$0xf]
  %s32 = scalar_lea.vmem %s0, 6
  %v33 = vld [vmem:[%s32] ss:$8 sm:$0xf0]
  %vm34 = vcmask 1047556
  %v35 = vsel %vm34, %v33, %v31
  %36 = vrot.lane.b32.xlu0 %v35, 96
  %v37 = vpop.permute.xlu0 %36
  %vm38 = vcmask 917248
  %39 = vst.msk [vmem:[%s1] sm:$0xff] %vm38, %v37
  %s40 = scalar_lea.vmem %s0, 70
  %v41 = vld [vmem:[%s40] sm:$0x1]
  %42 = vrot.lane.b32.xlu0 %v41, 96
  %v43 = vpop.permute.xlu0 %42
  %vm44 = vcmask 917248
  %s45 = scalar_lea.vmem %s1, 8
  %46 = vst.msk [vmem:[%s45] sm:$0x1] %vm44, %v43
  %s47 = scalar_lea.vmem %s0, 5
  %v48 = vld [vmem:[%s47] ss:$8 sm:$0xf]
  %s49 = scalar_lea.vmem %s0, 5
  %v50 = vld [vmem:[%s49] ss:$8 sm:$0xf0]
  %vm51 = vcmask 1047556
  %v52 = vsel %vm51, %v50, %v48
  %53 = vrot.lane.b32.xlu0 %v52, 80
  %v54 = vpop.permute.xlu0 %53
  %vm55 = vcmask 786048
  %56 = vst.msk [vmem:[%s1] sm:$0xff] %vm55, %v54
  %s57 = scalar_lea.vmem %s0, 69
  %v58 = vld [vmem:[%s57] sm:$0x1]
  %59 = vrot.lane.b32.xlu0 %v58, 80
  %v60 = vpop.permute.xlu0 %59
  %vm61 = vcmask 786048
  %s62 = scalar_lea.vmem %s1, 8
  %63 = vst.msk [vmem:[%s62] sm:$0x1] %vm61, %v60
  %s64 = scalar_lea.vmem %s0, 4
  %v65 = vld [vmem:[%s64] ss:$8 sm:$0xf]
  %s66 = scalar_lea.vmem %s0, 4
  %v67 = vld [vmem:[%s66] ss:$8 sm:$0xf0]
  %vm68 = vcmask 1047556
  %v69 = vsel %vm68, %v67, %v65
  %70 = vrot.lane.b32.xlu0 %v69, 64
  %v71 = vpop.permute.xlu0 %70
  %vm72 = vcmask 654848
  %73 = vst.msk [vmem:[%s1] sm:$0xff] %vm72, %v71
  %s74 = scalar_lea.vmem %s0, 68
  %v75 = vld [vmem:[%s74] sm:$0x1]
  %76 = vrot.lane.b32.xlu0 %v75, 64
  %v77 = vpop.permute.xlu0 %76
  %vm78 = vcmask 654848
  %s79 = scalar_lea.vmem %s1, 8
  %80 = vst.msk [vmem:[%s79] sm:$0x1] %vm78, %v77
  %s81 = scalar_lea.vmem %s0, 3
  %v82 = vld [vmem:[%s81] ss:$8 sm:$0xf]
  %s83 = scalar_lea.vmem %s0, 3
  %v84 = vld [vmem:[%s83] ss:$8 sm:$0xf0]
  %vm85 = vcmask 1047556
  %v86 = vsel %vm85, %v84, %v82
  %87 = vrot.lane.b32.xlu0 %v86, 48
  %v88 = vpop.permute.xlu0 %87
  %vm89 = vcmask 523648
  %90 = vst.msk [vmem:[%s1] sm:$0xff] %vm89, %v88
  %s91 = scalar_lea.vmem %s0, 67
  %v92 = vld [vmem:[%s91] sm:$0x1]
  %93 = vrot.lane.b32.xlu0 %v92, 48
  %v94 = vpop.permute.xlu0 %93
  %vm95 = vcmask 523648
  %s96 = scalar_lea.vmem %s1, 8
  %97 = vst.msk [vmem:[%s96] sm:$0x1] %vm95, %v94
  %s98 = scalar_lea.vmem %s0, 2
  %v99 = vld [vmem:[%s98] ss:$8 sm:$0xf]
  %s100 = scalar_lea.vmem %s0, 2
  %v101 = vld [vmem:[%s100] ss:$8 sm:$0xf0]
  %vm102 = vcmask 1047556
  %v103 = vsel %vm102, %v101, %v99
  %104 = vrot.lane.b32.xlu0 %v103, 32
  %v105 = vpop.permute.xlu0 %104
  %vm106 = vcmask 392448
  %107 = vst.msk [vmem:[%s1] sm:$0xff] %vm106, %v105
  %s108 = scalar_lea.vmem %s0, 66
  %v109 = vld [vmem:[%s108] sm:$0x1]
  %110 = vrot.lane.b32.xlu0 %v109, 32
  %v111 = vpop.permute.xlu0 %110
  %vm112 = vcmask 392448
  %s113 = scalar_lea.vmem %s1, 8
  %114 = vst.msk [vmem:[%s113] sm:$0x1] %vm112, %v111
  %s115 = scalar_lea.vmem %s0, 1
  %v116 = vld [vmem:[%s115] ss:$8 sm:$0xf]
  %s117 = scalar_lea.vmem %s0, 1
  %v118 = vld [vmem:[%s117] ss:$8 sm:$0xf0]
  %vm119 = vcmask 1047556
  %v120 = vsel %vm119, %v118, %v116
  %121 = vrot.lane.b32.xlu0 %v120, 16
  %v122 = vpop.permute.xlu0 %121
  %vm123 = vcmask 261248
  %124 = vst.msk [vmem:[%s1] sm:$0xff] %vm123, %v122
  %s125 = scalar_lea.vmem %s0, 65
  %v126 = vld [vmem:[%s125] sm:$0x1]
  %127 = vrot.lane.b32.xlu0 %v126, 16
  %v128 = vpop.permute.xlu0 %127
  %vm129 = vcmask 261248
  %s130 = scalar_lea.vmem %s1, 8
  %131 = vst.msk [vmem:[%s130] sm:$0x1] %vm129, %v128

// kernel: tile.69
$region0: #{tile.69}
  %s0 = inlined_call_operand.vmem [shape: f32[8,8,16], index: 0, kind: input, shape index: {}]
  %s1 = inlined_call_operand.vmem [shape: f32[8,128], index: 1, kind: output, shape index: {}]
  %v2 = vld [vmem:[%s0] ss:$8 sm:$0xf]
  %v3 = vld [vmem:[%s0] ss:$8 sm:$0xf0]
  %vm4 = vcmask 1047556
  %v5 = vsel %vm4, %v3, %v2
  %vm6 = vcmask 130048
  %7 = vst.msk [vmem:[%s1] sm:$0xff] %vm6, %v5
  %s8 = scalar_lea.vmem %s0, 7
  %v9 = vld [vmem:[%s8] ss:$8 sm:$0xf]
  %s10 = scalar_lea.vmem %s0, 7
  %v11 = vld [vmem:[%s10] ss:$8 sm:$0xf0]
  %vm12 = vcmask 1047556
  %v13 = vsel %vm12, %v11, %v9
  %14 = vrot.lane.b32.xlu0 %v13, 112
  %v15 = vpop.permute.xlu0 %14
  %vm16 = vcmask 1048448
  %17 = vst.msk [vmem:[%s1] sm:$0xff] %vm16, %v15
  %s18 = scalar_lea.vmem %s0, 6
  %v19 = vld [vmem:[%s18] ss:$8 sm:$0xf]
  %s20 = scalar_lea.vmem %s0, 6
  %v21 = vld [vmem:[%s20] ss:$8 sm:$0xf0]
  %vm22 = vcmask 1047556
  %v23 = vsel %vm22, %v21, %v19
  %24 = vrot.lane.b32.xlu0 %v23, 96
  %v25 = vpop.permute.xlu0 %24
  %vm26 = vcmask 917248
  %27 = vst.msk [vmem:[%s1] sm:$0xff] %vm26, %v25
  %s28 = scalar_lea.vmem %s0, 5
  %v29 = vld [vmem:[%s28] ss:$8 sm:$0xf]
  %s30 = scalar_lea.vmem %s0, 5
  %v31 = vld [vmem:[%s30] ss:$8 sm:$0xf0]
  %vm32 = vcmask 1047556
  %v33 = vsel %vm32, %v31, %v29
  %34 = vrot.lane.b32.xlu0 %v33, 80
  %v35 = vpop.permute.xlu0 %34
  %vm36 = vcmask 786048
  %37 = vst.msk [vmem:[%s1] sm:$0xff] %vm36, %v35
  %s38 = scalar_lea.vmem %s0, 4
  %v39 = vld [vmem:[%s38] ss:$8 sm:$0xf]
  %s40 = scalar_lea.vmem %s0, 4
  %v41 = vld [vmem:[%s40] ss:$8 sm:$0xf0]
  %vm42 = vcmask 1047556
  %v43 = vsel %vm42, %v41, %v39
  %44 = vrot.lane.b32.xlu0 %v43, 64
  %v45 = vpop.permute.xlu0 %44
  %vm46 = vcmask 654848
  %47 = vst.msk [vmem:[%s1] sm:$0xff] %vm46, %v45
  %s48 = scalar_lea.vmem %s0, 3
  %v49 = vld [vmem:[%s48] ss:$8 sm:$0xf]
  %s50 = scalar_lea.vmem %s0, 3
  %v51 = vld [vmem:[%s50] ss:$8 sm:$0xf0]
  %vm52 = vcmask 1047556
  %v53 = vsel %vm52, %v51, %v49
  %54 = vrot.lane.b32.xlu0 %v53, 48
  %v55 = vpop.permute.xlu0 %54
  %vm56 = vcmask 523648
  %57 = vst.msk [vmem:[%s1] sm:$0xff] %vm56, %v55
  %s58 = scalar_lea.vmem %s0, 2
  %v59 = vld [vmem:[%s58] ss:$8 sm:$0xf]
  %s60 = scalar_lea.vmem %s0, 2
  %v61 = vld [vmem:[%s60] ss:$8 sm:$0xf0]
  %vm62 = vcmask 1047556
  %v63 = vsel %vm62, %v61, %v59
  %64 = vrot.lane.b32.xlu0 %v63, 32
  %v65 = vpop.permute.xlu0 %64
  %vm66 = vcmask 392448
  %67 = vst.msk [vmem:[%s1] sm:$0xff] %vm66, %v65
  %s68 = scalar_lea.vmem %s0, 1
  %v69 = vld [vmem:[%s68] ss:$8 sm:$0xf]
  %s70 = scalar_lea.vmem %s0, 1
  %v71 = vld [vmem:[%s70] ss:$8 sm:$0xf0]
  %vm72 = vcmask 1047556
  %v73 = vsel %vm72, %v71, %v69
  %74 = vrot.lane.b32.xlu0 %v73, 16
  %v75 = vpop.permute.xlu0 %74
  %vm76 = vcmask 261248
  %77 = vst.msk [vmem:[%s1] sm:$0xff] %vm76, %v75

// kernel: bottleneck_forward.1
$region0: #{bottleneck_forward.1}
  #allocation0 [shape = 'u32[]', space=smem, size = 0x4, offset = 0x4, fixed_abs, tag = 'smem constant byte address 0x4 - core index']
  #allocation1 [shape = 'u32[72,128]{1,0:T(1,128)}', space=vmem, size = 0x9000, scoped, tag = 'internal scratch']
  %s0 = inlined_call_operand.vmem [shape: f32[16,512], index: 0, kind: input, shape index: {}]
  %s1 = inlined_call_operand.vmem [shape: bf16[512,128], index: 1, kind: input, shape index: {}]
  %s2 = inlined_call_operand.vmem [shape: f32[1,128], index: 2, kind: input, shape index: {}]
  %s3 = inlined_call_operand.vmem [shape: bf16[128,128], index: 3, kind: input, shape index: {}]
  %s4 = inlined_call_operand.vmem [shape: f32[1,128], index: 4, kind: input, shape index: {}]
  %s5 = inlined_call_operand.vmem [shape: f32[9,128], index: 5, kind: input, shape index: {}]
  %s6 = inlined_call_operand.vmem [shape: f32[1,128], index: 6, kind: input, shape index: {}]
  %s7 = inlined_call_operand.vmem [shape: f32[128,8], index: 7, kind: input, shape index: {}]
  %s8 = inlined_call_operand.vmem [shape: f32[1,8], index: 8, kind: input, shape index: {}]
  %s9 = inlined_call_operand.vmem [shape: f32[8,128], index: 9, kind: input, shape index: {}]
  %s10 = inlined_call_operand.vmem [shape: f32[1,128], index: 10, kind: input, shape index: {}]
  %s11 = inlined_call_operand.vmem [shape: bf16[128,512], index: 11, kind: input, shape index: {}]
  %s12 = inlined_call_operand.vmem [shape: f32[1,512], index: 12, kind: input, shape index: {}]
  %s13 = inlined_call_operand.vmem [shape: f32[1,512], index: 13, kind: input, shape index: {}]
  %s14 = inlined_call_operand.vmem [shape: f32[1,512], index: 14, kind: input, shape index: {}]
  %s15 = inlined_call_operand.vmem [shape: bf16[512,512], index: 15, kind: input, shape index: {}]
  %s16 = inlined_call_operand.vmem [shape: f32[1,512], index: 16, kind: input, shape index: {}]
  %s17 = inlined_call_operand.vmem [shape: f32[16,512], index: 17, kind: output, shape index: {}]
  %s18 = sld [smem:[#allocation0]]
  $region78: #{bottleneck_forward.1} parent=0
    _
  %s20 = ssub.s32 1, %s18
  %s21 = scalar_select 0, %s20, %s18
  // Predicated region
  $region2: #{bottleneck_forward.1} parent=0 // pred_check
    _
  $region3: #{bottleneck_forward.1} parent=0 // pred_check_branch
    %23 = sbr.rel (0) target = $region5
  $region4: #{bottleneck_forward.1} parent=0 // pred_region
    _
  $region5: #{bottleneck_forward.1} parent=0 // pred_fallthru
    _
  // Predicated region
  $region6: #{bottleneck_forward.1} parent=0 // pred_check
    _
  $region7: #{bottleneck_forward.1} parent=0 // pred_check_branch
    %25 = sbr.rel (0) target = $region9
  $region8: #{bottleneck_forward.1} parent=0 // pred_region
    _
  $region9: #{bottleneck_forward.1} parent=0 // pred_fallthru
    _
  // Predicated region
  $region10: #{bottleneck_forward.1} parent=0 // pred_check
    _
  $region11: #{bottleneck_forward.1} parent=0 // pred_check_branch
    %27 = sbr.rel (0) target = $region13
  $region12: #{bottleneck_forward.1} parent=0 // pred_region
    _
  $region13: #{bottleneck_forward.1} parent=0 // pred_fallthru
    _
  // Predicated region
  $region14: #{bottleneck_forward.1} parent=0 // pred_check
    _
  $region15: #{bottleneck_forward.1} parent=0 // pred_check_branch
    %29 = sbr.rel (0) target = $region17
  $region16: #{bottleneck_forward.1} parent=0 // pred_region
    _
  $region17: #{bottleneck_forward.1} parent=0 // pred_fallthru
    _
  // Predicated region
  $region18: #{bottleneck_forward.1} parent=0 // pred_check
    _
  $region19: #{bottleneck_forward.1} parent=0 // pred_check_branch
    %31 = sbr.rel (0) target = $region21
  $region20: #{bottleneck_forward.1} parent=0 // pred_region
    _
  $region21: #{bottleneck_forward.1} parent=0 // pred_fallthru
    _
  // Predicated region
  $region22: #{bottleneck_forward.1} parent=0 // pred_check
    _
  $region23: #{bottleneck_forward.1} parent=0 // pred_check_branch
    %33 = sbr.rel (0) target = $region25
  $region24: #{bottleneck_forward.1} parent=0 // pred_region
    _
  $region25: #{bottleneck_forward.1} parent=0 // pred_fallthru
    _
  // Predicated region
  $region26: #{bottleneck_forward.1} parent=0 // pred_check
    _
  $region27: #{bottleneck_forward.1} parent=0 // pred_check_branch
    %35 = sbr.rel (0) target = $region29
  $region28: #{bottleneck_forward.1} parent=0 // pred_region
    _
  $region29: #{bottleneck_forward.1} parent=0 // pred_fallthru
    _
  // Predicated region
  $region30: #{bottleneck_forward.1} parent=0 // pred_check
    _
  $region31: #{bottleneck_forward.1} parent=0 // pred_check_branch
    %37 = sbr.rel (0) target = $region33
  $region32: #{bottleneck_forward.1} parent=0 // pred_region
    _
  $region33: #{bottleneck_forward.1} parent=0 // pred_fallthru
    _
  // Predicated region
  $region34: #{bottleneck_forward.1} parent=0 // pred_check
    _
  $region35: #{bottleneck_forward.1} parent=0 // pred_check_branch
    %39 = sbr.rel (0) target = $region37
  $region36: #{bottleneck_forward.1} parent=0 // pred_region
    _
  $region37: #{bottleneck_forward.1} parent=0 // pred_fallthru
    _
  // Predicated region
  $region38: #{bottleneck_forward.1} parent=0 // pred_check
    _
  $region39: #{bottleneck_forward.1} parent=0 // pred_check_branch
    %41 = sbr.rel (0) target = $region41
  $region40: #{bottleneck_forward.1} parent=0 // pred_region
    _
  $region41: #{bottleneck_forward.1} parent=0 // pred_fallthru
    _
  // Predicated region
  $region42: #{bottleneck_forward.1} parent=0 // pred_check
    _
  $region43: #{bottleneck_forward.1} parent=0 // pred_check_branch
    %43 = sbr.rel (0) target = $region45
  $region44: #{bottleneck_forward.1} parent=0 // pred_region
    _
  $region45: #{bottleneck_forward.1} parent=0 // pred_fallthru
    _
  // Predicated region
  $region46: #{bottleneck_forward.1} parent=0 // pred_check
    _
  $region47: #{bottleneck_forward.1} parent=0 // pred_check_branch
    %45 = sbr.rel (0) target = $region49
  $region48: #{bottleneck_forward.1} parent=0 // pred_region
    _
  $region49: #{bottleneck_forward.1} parent=0 // pred_fallthru
    _
  // Predicated region
  $region50: #{bottleneck_forward.1} parent=0 // pred_check
    _
  $region51: #{bottleneck_forward.1} parent=0 // pred_check_branch
    %47 = sbr.rel (0) target = $region53
  $region52: #{bottleneck_forward.1} parent=0 // pred_region
    _
  $region53: #{bottleneck_forward.1} parent=0 // pred_fallthru
    _
  // Predicated region
  $region54: #{bottleneck_forward.1} parent=0 // pred_check
    _
  $region55: #{bottleneck_forward.1} parent=0 // pred_check_branch
    %49 = sbr.rel (0) target = $region57
  $region56: #{bottleneck_forward.1} parent=0 // pred_region
    _
  $region57: #{bottleneck_forward.1} parent=0 // pred_fallthru
    _
  // Predicated region
  $region58: #{bottleneck_forward.1} parent=0 // pred_check
    _
  $region59: #{bottleneck_forward.1} parent=0 // pred_check_branch
    %51 = sbr.rel (0) target = $region61
  $region60: #{bottleneck_forward.1} parent=0 // pred_region
    _
  $region61: #{bottleneck_forward.1} parent=0 // pred_fallthru
    _
  // Predicated region
  $region62: #{bottleneck_forward.1} parent=0 // pred_check
    _
  $region63: #{bottleneck_forward.1} parent=0 // pred_check_branch
    %53 = sbr.rel (0) target = $region65
  $region64: #{bottleneck_forward.1} parent=0 // pred_region
    _
  $region65: #{bottleneck_forward.1} parent=0 // pred_fallthru
    _
  // Predicated region
  $region66: #{bottleneck_forward.1} parent=0 // pred_check
    _
  $region67: #{bottleneck_forward.1} parent=0 // pred_check_branch
    %55 = sbr.rel (0) target = $region69
  $region68: #{bottleneck_forward.1} parent=0 // pred_region
    _
  $region69: #{bottleneck_forward.1} parent=0 // pred_fallthru
    _
  %v56 = vld [vmem:[%s0] sm:$0xff]
  %v57 = vld [vmem:[%s0 + $0x8] sm:$0xff]
  %v58 = vld [vmem:[%s0 + $0x10] sm:$0xff]
  %v59 = vld [vmem:[%s0 + $0x18] sm:$0xff]
  %v60 = vld [vmem:[%s0 + $0x20] sm:$0xff]
  %v61 = vld [vmem:[%s0 + $0x28] sm:$0xff]
  %v62 = vld [vmem:[%s0 + $0x30] sm:$0xff]
  %v63 = vld [vmem:[%s0 + $0x38] sm:$0xff]
  %v64 = vpack.c.bf16 %v60, %v56
  %v65 = vpack.c.bf16 %v61, %v57
  %v66 = vpack.c.bf16 %v62, %v58
  %v67 = vpack.c.bf16 %v63, %v59
  %v68 = vld [vmem:[%s1] sm:$0xf]
  %v69 = vld [vmem:[%s1 + $0x4] sm:$0xf]
  %v70 = vld [vmem:[%s1 + $0x8] sm:$0xf]
  %v71 = vld [vmem:[%s1 + $0xc] sm:$0xf]
  %v72 = vld [vmem:[%s1 + $0x10] sm:$0xf]
  %v73 = vld [vmem:[%s1 + $0x14] sm:$0xf]
  %v74 = vld [vmem:[%s1 + $0x18] sm:$0xf]
  %v75 = vld [vmem:[%s1 + $0x1c] sm:$0xf]
  %v76 = vld [vmem:[%s1 + $0x20] sm:$0xf]
  %v77 = vld [vmem:[%s1 + $0x24] sm:$0xf]
  %v78 = vld [vmem:[%s1 + $0x28] sm:$0xf]
  %v79 = vld [vmem:[%s1 + $0x2c] sm:$0xf]
  %v80 = vld [vmem:[%s1 + $0x30] sm:$0xf]
  %v81 = vld [vmem:[%s1 + $0x34] sm:$0xf]
  %v82 = vld [vmem:[%s1 + $0x38] sm:$0xf]
  %v83 = vld [vmem:[%s1 + $0x3c] sm:$0xf]
  %v84 = vld [vmem:[%s1 + $0x40] sm:$0xf]
  %v85 = vld [vmem:[%s1 + $0x44] sm:$0xf]
  %v86 = vld [vmem:[%s1 + $0x48] sm:$0xf]
  %v87 = vld [vmem:[%s1 + $0x4c] sm:$0xf]
  %v88 = vld [vmem:[%s1 + $0x50] sm:$0xf]
  %v89 = vld [vmem:[%s1 + $0x54] sm:$0xf]
  %v90 = vld [vmem:[%s1 + $0x58] sm:$0xf]
  %v91 = vld [vmem:[%s1 + $0x5c] sm:$0xf]
  %v92 = vld [vmem:[%s1 + $0x60] sm:$0xf]
  %v93 = vld [vmem:[%s1 + $0x64] sm:$0xf]
  %v94 = vld [vmem:[%s1 + $0x68] sm:$0xf]
  %v95 = vld [vmem:[%s1 + $0x6c] sm:$0xf]
  %v96 = vld [vmem:[%s1 + $0x70] sm:$0xf]
  %v97 = vld [vmem:[%s1 + $0x74] sm:$0xf]
  %v98 = vld [vmem:[%s1 + $0x78] sm:$0xf]
  %v99 = vld [vmem:[%s1 + $0x7c] sm:$0xf]
  %v100 = vld [vmem:[%s1 + $0x80] sm:$0xf]
  %v101 = vld [vmem:[%s1 + $0x84] sm:$0xf]
  %v102 = vld [vmem:[%s1 + $0x88] sm:$0xf]
  %v103 = vld [vmem:[%s1 + $0x8c] sm:$0xf]
  %v104 = vld [vmem:[%s1 + $0x90] sm:$0xf]
  %v105 = vld [vmem:[%s1 + $0x94] sm:$0xf]
  %v106 = vld [vmem:[%s1 + $0x98] sm:$0xf]
  %v107 = vld [vmem:[%s1 + $0x9c] sm:$0xf]
  %v108 = vld [vmem:[%s1 + $0xa0] sm:$0xf]
  %v109 = vld [vmem:[%s1 + $0xa4] sm:$0xf]
  %v110 = vld [vmem:[%s1 + $0xa8] sm:$0xf]
  %v111 = vld [vmem:[%s1 + $0xac] sm:$0xf]
  %v112 = vld [vmem:[%s1 + $0xb0] sm:$0xf]
  %v113 = vld [vmem:[%s1 + $0xb4] sm:$0xf]
  %v114 = vld [vmem:[%s1 + $0xb8] sm:$0xf]
  %v115 = vld [vmem:[%s1 + $0xbc] sm:$0xf]
  %v116 = vld [vmem:[%s1 + $0xc0] sm:$0xf]
  %v117 = vld [vmem:[%s1 + $0xc4] sm:$0xf]
  %v118 = vld [vmem:[%s1 + $0xc8] sm:$0xf]
  %v119 = vld [vmem:[%s1 + $0xcc] sm:$0xf]
  %v120 = vld [vmem:[%s1 + $0xd0] sm:$0xf]
  %v121 = vld [vmem:[%s1 + $0xd4] sm:$0xf]
  %v122 = vld [vmem:[%s1 + $0xd8] sm:$0xf]
  %v123 = vld [vmem:[%s1 + $0xdc] sm:$0xf]
  %v124 = vld [vmem:[%s1 + $0xe0] sm:$0xf]
  %v125 = vld [vmem:[%s1 + $0xe4] sm:$0xf]
  %v126 = vld [vmem:[%s1 + $0xe8] sm:$0xf]
  %v127 = vld [vmem:[%s1 + $0xec] sm:$0xf]
  %v128 = vld [vmem:[%s1 + $0xf0] sm:$0xf]
  %v129 = vld [vmem:[%s1 + $0xf4] sm:$0xf]
  %v130 = vld [vmem:[%s1 + $0xf8] sm:$0xf]
  %v131 = vld [vmem:[%s1 + $0xfc] sm:$0xf]
  %v132 = vld [vmem:[%s2] sm:$0x1]
  %v134 = vperm.slane %v132, 0
  %v200 = vunpack.c.l.b16 %v68
  %v201 = vunpack.c.l.b16 %v69
  %v202 = vunpack.c.l.b16 %v70
  %v203 = vunpack.c.l.b16 %v71
  %v204 = vunpack.c.l.b16 %v72
  %v205 = vunpack.c.l.b16 %v73
  %v206 = vunpack.c.l.b16 %v74
  %v207 = vunpack.c.l.b16 %v75
  %v208 = vunpack.c.l.b16 %v76
  %v209 = vunpack.c.l.b16 %v77
  %v210 = vunpack.c.l.b16 %v78
  %v211 = vunpack.c.l.b16 %v79
  %v212 = vunpack.c.l.b16 %v80
  %v213 = vunpack.c.l.b16 %v81
  %v214 = vunpack.c.l.b16 %v82
  %v215 = vunpack.c.l.b16 %v83
  %v216 = vunpack.c.l.b16 %v84
  %v217 = vunpack.c.l.b16 %v85
  %v218 = vunpack.c.l.b16 %v86
  %v219 = vunpack.c.l.b16 %v87
  %v220 = vunpack.c.l.b16 %v88
  %v221 = vunpack.c.l.b16 %v89
  %v222 = vunpack.c.l.b16 %v90
  %v223 = vunpack.c.l.b16 %v91
  %v224 = vunpack.c.l.b16 %v92
  %v225 = vunpack.c.l.b16 %v93
  %v226 = vunpack.c.l.b16 %v94
  %v227 = vunpack.c.l.b16 %v95
  %v228 = vunpack.c.l.b16 %v96
  %v229 = vunpack.c.l.b16 %v97
  %v230 = vunpack.c.l.b16 %v98
  %v231 = vunpack.c.l.b16 %v99
  %v232 = vunpack.c.l.b16 %v100
  %v233 = vunpack.c.l.b16 %v101
  %v234 = vunpack.c.l.b16 %v102
  %v235 = vunpack.c.l.b16 %v103
  %v236 = vunpack.c.l.b16 %v104
  %v237 = vunpack.c.l.b16 %v105
  %v238 = vunpack.c.l.b16 %v106
  %v239 = vunpack.c.l.b16 %v107
  %v240 = vunpack.c.l.b16 %v108
  %v241 = vunpack.c.l.b16 %v109
  %v242 = vunpack.c.l.b16 %v110
  %v243 = vunpack.c.l.b16 %v111
  %v244 = vunpack.c.l.b16 %v112
  %v245 = vunpack.c.l.b16 %v113
  %v246 = vunpack.c.l.b16 %v114
  %v247 = vunpack.c.l.b16 %v115
  %v248 = vunpack.c.l.b16 %v116
  %v249 = vunpack.c.l.b16 %v117
  %v250 = vunpack.c.l.b16 %v118
  %v251 = vunpack.c.l.b16 %v119
  %v252 = vunpack.c.l.b16 %v120
  %v253 = vunpack.c.l.b16 %v121
  %v254 = vunpack.c.l.b16 %v122
  %v255 = vunpack.c.l.b16 %v123
  %v256 = vunpack.c.l.b16 %v124
  %v257 = vunpack.c.l.b16 %v125
  %v258 = vunpack.c.l.b16 %v126
  %v259 = vunpack.c.l.b16 %v127
  %v260 = vunpack.c.l.b16 %v128
  %v261 = vunpack.c.l.b16 %v129
  %v262 = vunpack.c.l.b16 %v130
  %v263 = vunpack.c.l.b16 %v131
  %v264 = vpack.c.b16 %v201, %v200
  %v265 = vpack.c.b16 %v203, %v202
  %v266 = vpack.c.b16 %v205, %v204
  %v267 = vpack.c.b16 %v207, %v206
  %v268 = vpack.c.b16 %v209, %v208
  %v269 = vpack.c.b16 %v211, %v210
  %v270 = vpack.c.b16 %v213, %v212
  %v271 = vpack.c.b16 %v215, %v214
  %v272 = vpack.c.b16 %v217, %v216
  %v273 = vpack.c.b16 %v219, %v218
  %v274 = vpack.c.b16 %v221, %v220
  %v275 = vpack.c.b16 %v223, %v222
  %v276 = vpack.c.b16 %v225, %v224
  %v277 = vpack.c.b16 %v227, %v226
  %v278 = vpack.c.b16 %v229, %v228
  %v279 = vpack.c.b16 %v231, %v230
  %v280 = vpack.c.b16 %v233, %v232
  %v281 = vpack.c.b16 %v235, %v234
  %v282 = vpack.c.b16 %v237, %v236
  %v283 = vpack.c.b16 %v239, %v238
  %v284 = vpack.c.b16 %v241, %v240
  %v285 = vpack.c.b16 %v243, %v242
  %v286 = vpack.c.b16 %v245, %v244
  %v287 = vpack.c.b16 %v247, %v246
  %v288 = vpack.c.b16 %v249, %v248
  %v289 = vpack.c.b16 %v251, %v250
  %v290 = vpack.c.b16 %v253, %v252
  %v291 = vpack.c.b16 %v255, %v254
  %v292 = vpack.c.b16 %v257, %v256
  %v293 = vpack.c.b16 %v259, %v258
  %v294 = vpack.c.b16 %v261, %v260
  %v295 = vpack.c.b16 %v263, %v262
  %328 = vmatpush.bf16.msra.mxu0 %v271
  %329 = vmatpush.bf16.msra.mxu0 %v270
  %330 = vmatpush.bf16.msra.mxu0 %v269
  %331 = vmatpush.bf16.msra.mxu0 %v268
  %332 = vmatpush.bf16.msra.mxu0 %v267
  %333 = vmatpush.bf16.msra.mxu0 %v266
  %334 = vmatpush.bf16.msra.mxu0 %v265
  %335 = vmatpush.bf16.msra.mxu0 %v264
  %336 = vmatmul.bf16.gmra.mxu0 %v64
  %v337 = vpop.f32.mrf.mxu0
  %v338 = vadd.f32 %v134, %v337
  %v339 = vpop.f32.mrf.mxu0
  %v340 = vadd.f32 %v134, %v339
  %341 = vdwg.mxu0
  %342 = vmatpush.bf16.msra.mxu0 %v279
  %343 = vmatpush.bf16.msra.mxu0 %v278
  %344 = vmatpush.bf16.msra.mxu0 %v277
  %345 = vmatpush.bf16.msra.mxu0 %v276
  %346 = vmatpush.bf16.msra.mxu0 %v275
  %347 = vmatpush.bf16.msra.mxu0 %v274
  %348 = vmatpush.bf16.msra.mxu0 %v273
  %349 = vmatpush.bf16.msra.mxu0 %v272
  %350 = vmatmul.bf16.gmra.mxu0 %v65
  %v351 = vpop.f32.mrf.mxu0
  %v352 = vadd.f32 %v338, %v351
  %v353 = vpop.f32.mrf.mxu0
  %v354 = vadd.f32 %v340, %v353
  %355 = vdwg.mxu0
  %356 = vmatpush.bf16.msra.mxu0 %v287
  %357 = vmatpush.bf16.msra.mxu0 %v286
  %358 = vmatpush.bf16.msra.mxu0 %v285
  %359 = vmatpush.bf16.msra.mxu0 %v284
  %360 = vmatpush.bf16.msra.mxu0 %v283
  %361 = vmatpush.bf16.msra.mxu0 %v282
  %362 = vmatpush.bf16.msra.mxu0 %v281
  %363 = vmatpush.bf16.msra.mxu0 %v280
  %364 = vmatmul.bf16.gmra.mxu0 %v66
  %v365 = vpop.f32.mrf.mxu0
  %v366 = vadd.f32 %v352, %v365
  %v367 = vpop.f32.mrf.mxu0
  %v368 = vadd.f32 %v354, %v367
  %369 = vdwg.mxu0
  %370 = vmatpush.bf16.msra.mxu0 %v295
  %371 = vmatpush.bf16.msra.mxu0 %v294
  %372 = vmatpush.bf16.msra.mxu0 %v293
  %373 = vmatpush.bf16.msra.mxu0 %v292
  %374 = vmatpush.bf16.msra.mxu0 %v291
  %375 = vmatpush.bf16.msra.mxu0 %v290
  %376 = vmatpush.bf16.msra.mxu0 %v289
  %377 = vmatpush.bf16.msra.mxu0 %v288
  %378 = vmatmul.bf16.gmra.mxu0 %v67
  %v379 = vpop.f32.mrf.mxu0
  %v380 = vadd.f32 %v366, %v379
  %v381 = vpop.f32.mrf.mxu0
  %v382 = vadd.f32 %v368, %v381
  %383 = vdwg.mxu0
  %v384 = vlaneseq
  %v385 = vshrl.u32 %v384, 7
  %v386 = vadd.s32 %v385, 8
  %vm387 = vcmp.lt.s32.totalorder %v385, 0
  %v388 = vsub.s32 0, %v385
  %v389 = vsel %vm387, %v388, %v385
  %v390 = vshrl.u32 %v389, 3
  %v391 = vand.u32 %v389, 7
  %v392 = vsub.s32 0, %v391
  %v393 = vsel %vm387, %v392, %v391
  %vm394 = vcmp.lt.s32.totalorder %v386, 0
  %v395 = vsub.s32 0, %v386
  %v396 = vsel %vm394, %v395, %v386
  %v397 = vshrl.u32 %v396, 3
  %v398 = vand.u32 %v396, 7
  %v399 = vsub.s32 0, %v398
  %v400 = vsel %vm394, %v399, %v398
  %vm401 = vcmp.ne.s32.totalorder %v393, 0
  %vm402 = vcmp.ne.s32.totalorder %v400, 0
  %vm403 = vcmp.lt.s32.totalorder %v393, 0
  %vm404 = vcmp.lt.s32.totalorder %v400, 0
  %vm405 = vmand %vm403, %vm401
  %vm406 = vmand %vm404, %vm402
  %v407 = vadd.s32 %v393, 8
  %v408 = vadd.s32 %v400, 8
  %v409 = vsel %vm405, %v407, %v393
  %v410 = vsel %vm406, %v408, %v400
  %vm411 = vcmp.ne.s32.totalorder %v409, 0
  %vm412 = vcmp.ne.s32.totalorder %v410, 0
  %v413 = vsel %vm411, 1, 0
  %v414 = vsel %vm412, 1, 0
  %v415 = vcvt.s32.f32 %v413
  %v416 = vcvt.s32.f32 %v414
  %vm417 = vcmp.ne.s32.totalorder %v409, 7
  %vm418 = vcmp.ne.s32.totalorder %v410, 7
  %v419 = vsel %vm417, 1, 0
  %v420 = vsel %vm418, 1, 0
  %v421 = vcvt.s32.f32 %v419
  %v422 = vcvt.s32.f32 %v420
  %v423 = vld [vmem:[%s5] sm:$0xff]
  %v424 = vld [vmem:[%s5 + $0x8] sm:$0x1]
  %v425 = vld [vmem:[%s6] sm:$0x1]
  %v426 = vpack.c.bf16 %v382, %v380
  %v427 = vld [vmem:[%s3] sm:$0xf]
  %v428 = vld [vmem:[%s3 + $0x4] sm:$0xf]
  %v429 = vld [vmem:[%s3 + $0x8] sm:$0xf]
  %v430 = vld [vmem:[%s3 + $0xc] sm:$0xf]
  %v431 = vld [vmem:[%s3 + $0x10] sm:$0xf]
  %v432 = vld [vmem:[%s3 + $0x14] sm:$0xf]
  %v433 = vld [vmem:[%s3 + $0x18] sm:$0xf]
  %v434 = vld [vmem:[%s3 + $0x1c] sm:$0xf]
  %v435 = vld [vmem:[%s3 + $0x20] sm:$0xf]
  %v436 = vld [vmem:[%s3 + $0x24] sm:$0xf]
  %v437 = vld [vmem:[%s3 + $0x28] sm:$0xf]
  %v438 = vld [vmem:[%s3 + $0x2c] sm:$0xf]
  %v439 = vld [vmem:[%s3 + $0x30] sm:$0xf]
  %v440 = vld [vmem:[%s3 + $0x34] sm:$0xf]
  %v441 = vld [vmem:[%s3 + $0x38] sm:$0xf]
  %v442 = vld [vmem:[%s3 + $0x3c] sm:$0xf]
  %v443 = vld [vmem:[%s4] sm:$0x1]
  %v445 = vperm.slane %v443, 0
  %v463 = vunpack.c.l.b16 %v427
  %v464 = vunpack.c.l.b16 %v428
  %v465 = vunpack.c.l.b16 %v429
  %v466 = vunpack.c.l.b16 %v430
  %v467 = vunpack.c.l.b16 %v431
  %v468 = vunpack.c.l.b16 %v432
  %v469 = vunpack.c.l.b16 %v433
  %v470 = vunpack.c.l.b16 %v434
  %v471 = vunpack.c.l.b16 %v435
  %v472 = vunpack.c.l.b16 %v436
  %v473 = vunpack.c.l.b16 %v437
  %v474 = vunpack.c.l.b16 %v438
  %v475 = vunpack.c.l.b16 %v439
  %v476 = vunpack.c.l.b16 %v440
  %v477 = vunpack.c.l.b16 %v441
  %v478 = vunpack.c.l.b16 %v442
  %v479 = vpack.c.b16 %v464, %v463
  %v480 = vpack.c.b16 %v466, %v465
  %v481 = vpack.c.b16 %v468, %v467
  %v482 = vpack.c.b16 %v470, %v469
  %v483 = vpack.c.b16 %v472, %v471
  %v484 = vpack.c.b16 %v474, %v473
  %v485 = vpack.c.b16 %v476, %v475
  %v486 = vpack.c.b16 %v478, %v477
  %495 = vmatpush.bf16.msra.mxu0 %v486
  %496 = vmatpush.bf16.msra.mxu0 %v485
  %497 = vmatpush.bf16.msra.mxu0 %v484
  %498 = vmatpush.bf16.msra.mxu0 %v483
  %499 = vmatpush.bf16.msra.mxu0 %v482
  %500 = vmatpush.bf16.msra.mxu0 %v481
  %501 = vmatpush.bf16.msra.mxu0 %v480
  %502 = vmatpush.bf16.msra.mxu0 %v479
  %503 = vmatmul.bf16.gmra.mxu0 %v426
  %v504 = vpop.f32.mrf.mxu0
  %v505 = vadd.f32 %v445, %v504
  %v506 = vpop.f32.mrf.mxu0
  %v507 = vadd.f32 %v445, %v506
  %508 = vdwg.mxu0
  %v509 = vrot.slane %v505, 7
  %v510 = vrot.slane %v507, 7
  %vm511 = vcmp.lt.s32.totalorder %v385, 1
  %v512 = vsel %vm511, %v509, %v510
  %v513 = vsel %vm511, %v510, %v509
  %v514 = vmul.f32 %v513, %v415
  %v515 = vmul.f32 %v512, %v416
  %v516 = vrot.slane %v505, 1
  %v517 = vrot.slane %v507, 1
  %vm518 = vcmp.lt.s32.totalorder %v385, 7
  %v519 = vsel %vm518, %v516, %v517
  %v520 = vsel %vm518, %v517, %v516
  %v521 = vmul.f32 %v519, %v421
  %v522 = vmul.f32 %v520, %v422
  %523 = vrot.lane.b32.xlu0 %v514, 16
  %v524 = vpop.permute.xlu0 %523
  %525 = vrot.lane.b32.xlu0 %v515, 16
  %v526 = vpop.permute.xlu0 %525
  %v527 = vperm.slane %v423, 0
  %v528 = vmul.f32 %v527, %v524
  %v529 = vmul.f32 %v527, %v526
  %v530 = vadd.f32 %v528, 0.0
  %v531 = vadd.f32 %v529, 0.0
  %v532 = vperm.slane %v423, 1
  %v533 = vmul.f32 %v532, %v514
  %v534 = vmul.f32 %v532, %v515
  %v535 = vadd.f32 %v530, %v533
  %v536 = vadd.f32 %v531, %v534
  %537 = vrot.lane.b32.xlu0 %v514, 112
  %v538 = vpop.permute.xlu0 %537
  %539 = vrot.lane.b32.xlu0 %v515, 112
  %v540 = vpop.permute.xlu0 %539
  %v541 = vperm.slane %v423, 2
  %v542 = vmul.f32 %v541, %v538
  %v543 = vmul.f32 %v541, %v540
  %v544 = vadd.f32 %v535, %v542
  %v545 = vadd.f32 %v536, %v543
  %546 = vrot.lane.b32.xlu0 %v505, 16
  %v547 = vpop.permute.xlu0 %546
  %548 = vrot.lane.b32.xlu0 %v507, 16
  %v549 = vpop.permute.xlu0 %548
  %v550 = vperm.slane %v423, 3
  %v551 = vmul.f32 %v550, %v547
  %v552 = vmul.f32 %v550, %v549
  %v553 = vadd.f32 %v544, %v551
  %v554 = vadd.f32 %v545, %v552
  %v555 = vperm.slane %v423, 4
  %v556 = vmul.f32 %v555, %v505
  %v557 = vmul.f32 %v555, %v507
  %v558 = vadd.f32 %v553, %v556
  %v559 = vadd.f32 %v554, %v557
  %560 = vrot.lane.b32.xlu0 %v505, 112
  %v561 = vpop.permute.xlu0 %560
  %562 = vrot.lane.b32.xlu0 %v507, 112
  %v563 = vpop.permute.xlu0 %562
  %v564 = vperm.slane %v423, 5
  %v565 = vmul.f32 %v564, %v561
  %v566 = vmul.f32 %v564, %v563
  %v567 = vadd.f32 %v558, %v565
  %v568 = vadd.f32 %v559, %v566
  %569 = vrot.lane.b32.xlu0 %v521, 16
  %v570 = vpop.permute.xlu0 %569
  %571 = vrot.lane.b32.xlu0 %v522, 16
  %v572 = vpop.permute.xlu0 %571
  %v573 = vperm.slane %v423, 6
  %v574 = vmul.f32 %v573, %v570
  %v575 = vmul.f32 %v573, %v572
  %v576 = vadd.f32 %v567, %v574
  %v577 = vadd.f32 %v568, %v575
  %v578 = vperm.slane %v423, 7
  %v579 = vmul.f32 %v578, %v521
  %v580 = vmul.f32 %v578, %v522
  %v581 = vadd.f32 %v576, %v579
  %v582 = vadd.f32 %v577, %v580
  %583 = vrot.lane.b32.xlu0 %v521, 112
  %v584 = vpop.permute.xlu0 %583
  %585 = vrot.lane.b32.xlu0 %v522, 112
  %v586 = vpop.permute.xlu0 %585
  %v587 = vperm.slane %v424, 0
  %v588 = vmul.f32 %v587, %v584
  %v589 = vmul.f32 %v587, %v586
  %v590 = vadd.f32 %v581, %v588
  %v591 = vadd.f32 %v582, %v589
  %v593 = vperm.slane %v425, 0
  %v595 = vadd.f32 %v590, %v593
  %v596 = vadd.f32 %v591, %v593
  %v597 = vmax.f32 %v595, 0.0
  %v598 = vmax.f32 %v596, 0.0
  %v599 = vpack.c.bf16 %v598, %v597
  %600 = vmatpush.bf16.msra.mxu0 %v486
  %601 = vmatpush.bf16.msra.mxu0 %v485
  %602 = vmatpush.bf16.msra.mxu0 %v484
  %603 = vmatpush.bf16.msra.mxu0 %v483
  %604 = vmatpush.bf16.msra.mxu0 %v482
  %605 = vmatpush.bf16.msra.mxu0 %v481
  %606 = vmatpush.bf16.msra.mxu0 %v480
  %607 = vmatpush.bf16.msra.mxu0 %v479
  %608 = vmatmul.bf16.gmra.mxu0 %v599
  %v609 = vpop.f32.mrf.mxu0
  %v610 = vadd.f32 %v445, %v609
  %v611 = vpop.f32.mrf.mxu0
  %v612 = vadd.f32 %v445, %v611
  %613 = vdwg.mxu0
  %v614 = vrot.slane %v610, 7
  %v615 = vrot.slane %v612, 7
  %v616 = vsel %vm511, %v614, %v615
  %v617 = vsel %vm511, %v615, %v614
  %v618 = vmul.f32 %v617, %v415
  %v619 = vmul.f32 %v616, %v416
  %v620 = vrot.slane %v610, 1
  %v621 = vrot.slane %v612, 1
  %v622 = vsel %vm518, %v620, %v621
  %v623 = vsel %vm518, %v621, %v620
  %v624 = vmul.f32 %v622, %v421
  %v625 = vmul.f32 %v623, %v422
  %626 = vrot.lane.b32.xlu0 %v618, 16
  %v627 = vpop.permute.xlu0 %626
  %628 = vrot.lane.b32.xlu0 %v619, 16
  %v629 = vpop.permute.xlu0 %628
  %v630 = vmul.f32 %v527, %v627
  %v631 = vmul.f32 %v527, %v629
  %v632 = vadd.f32 %v630, 0.0
  %v633 = vadd.f32 %v631, 0.0
  %v634 = vmul.f32 %v532, %v618
  %v635 = vmul.f32 %v532, %v619
  %v636 = vadd.f32 %v632, %v634
  %v637 = vadd.f32 %v633, %v635
  %638 = vrot.lane.b32.xlu0 %v618, 112
  %v639 = vpop.permute.xlu0 %638
  %640 = vrot.lane.b32.xlu0 %v619, 112
  %v641 = vpop.permute.xlu0 %640
  %v642 = vmul.f32 %v541, %v639
  %v643 = vmul.f32 %v541, %v641
  %v644 = vadd.f32 %v636, %v642
  %v645 = vadd.f32 %v637, %v643
  %646 = vrot.lane.b32.xlu0 %v610, 16
  %v647 = vpop.permute.xlu0 %646
  %648 = vrot.lane.b32.xlu0 %v612, 16
  %v649 = vpop.permute.xlu0 %648
  %v650 = vmul.f32 %v550, %v647
  %v651 = vmul.f32 %v550, %v649
  %v652 = vadd.f32 %v644, %v650
  %v653 = vadd.f32 %v645, %v651
  %v654 = vmul.f32 %v555, %v610
  %v655 = vmul.f32 %v555, %v612
  %v656 = vadd.f32 %v652, %v654
  %v657 = vadd.f32 %v653, %v655
  %658 = vrot.lane.b32.xlu0 %v610, 112
  %v659 = vpop.permute.xlu0 %658
  %660 = vrot.lane.b32.xlu0 %v612, 112
  %v661 = vpop.permute.xlu0 %660
  %v662 = vmul.f32 %v564, %v659
  %v663 = vmul.f32 %v564, %v661
  %v664 = vadd.f32 %v656, %v662
  %v665 = vadd.f32 %v657, %v663
  %666 = vrot.lane.b32.xlu0 %v624, 16
  %v667 = vpop.permute.xlu0 %666
  %668 = vrot.lane.b32.xlu0 %v625, 16
  %v669 = vpop.permute.xlu0 %668
  %v670 = vmul.f32 %v573, %v667
  %v671 = vmul.f32 %v573, %v669
  %v672 = vadd.f32 %v664, %v670
  %v673 = vadd.f32 %v665, %v671
  %v674 = vmul.f32 %v578, %v624
  %v675 = vmul.f32 %v578, %v625
  %v676 = vadd.f32 %v672, %v674
  %v677 = vadd.f32 %v673, %v675
  %678 = vrot.lane.b32.xlu0 %v624, 112
  %v679 = vpop.permute.xlu0 %678
  %680 = vrot.lane.b32.xlu0 %v625, 112
  %v681 = vpop.permute.xlu0 %680
  %v682 = vmul.f32 %v587, %v679
  %v683 = vmul.f32 %v587, %v681
  %v684 = vadd.f32 %v676, %v682
  %v685 = vadd.f32 %v677, %v683
  %v686 = vadd.f32 %v684, %v593
  %v687 = vadd.f32 %v685, %v593
  %v688 = vmax.f32 %v686, 0.0
  %v689 = vmax.f32 %v687, 0.0
  %v690 = vpack.c.bf16 %v689, %v688
  %691 = vmatpush.bf16.msra.mxu0 %v486
  %692 = vmatpush.bf16.msra.mxu0 %v485
  %693 = vmatpush.bf16.msra.mxu0 %v484
  %694 = vmatpush.bf16.msra.mxu0 %v483
  %695 = vmatpush.bf16.msra.mxu0 %v482
  %696 = vmatpush.bf16.msra.mxu0 %v481
  %697 = vmatpush.bf16.msra.mxu0 %v480
  %698 = vmatpush.bf16.msra.mxu0 %v479
  %699 = vmatmul.bf16.gmra.mxu0 %v690
  %v700 = vpop.f32.mrf.mxu0
  %v701 = vadd.f32 %v445, %v700
  %v702 = vpop.f32.mrf.mxu0
  %v703 = vadd.f32 %v445, %v702
  %704 = vdwg.mxu0
  %v705 = vrot.slane %v701, 7
  %v706 = vrot.slane %v703, 7
  %v707 = vsel %vm511, %v705, %v706
  %v708 = vsel %vm511, %v706, %v705
  %v709 = vmul.f32 %v708, %v415
  %v710 = vmul.f32 %v707, %v416
  %v711 = vrot.slane %v701, 1
  %v712 = vrot.slane %v703, 1
  %v713 = vsel %vm518, %v711, %v712
  %v714 = vsel %vm518, %v712, %v711
  %v715 = vmul.f32 %v713, %v421
  %v716 = vmul.f32 %v714, %v422
  %717 = vrot.lane.b32.xlu0 %v709, 16
  %v718 = vpop.permute.xlu0 %717
  %719 = vrot.lane.b32.xlu0 %v710, 16
  %v720 = vpop.permute.xlu0 %719
  %v721 = vmul.f32 %v527, %v718
  %v722 = vmul.f32 %v527, %v720
  %v723 = vadd.f32 %v721, 0.0
  %v724 = vadd.f32 %v722, 0.0
  %v725 = vmul.f32 %v532, %v709
  %v726 = vmul.f32 %v532, %v710
  %v727 = vadd.f32 %v723, %v725
  %v728 = vadd.f32 %v724, %v726
  %729 = vrot.lane.b32.xlu0 %v709, 112
  %v730 = vpop.permute.xlu0 %729
  %731 = vrot.lane.b32.xlu0 %v710, 112
  %v732 = vpop.permute.xlu0 %731
  %v733 = vmul.f32 %v541, %v730
  %v734 = vmul.f32 %v541, %v732
  %v735 = vadd.f32 %v727, %v733
  %v736 = vadd.f32 %v728, %v734
  %737 = vrot.lane.b32.xlu0 %v701, 16
  %v738 = vpop.permute.xlu0 %737
  %739 = vrot.lane.b32.xlu0 %v703, 16
  %v740 = vpop.permute.xlu0 %739
  %v741 = vmul.f32 %v550, %v738
  %v742 = vmul.f32 %v550, %v740
  %v743 = vadd.f32 %v735, %v741
  %v744 = vadd.f32 %v736, %v742
  %v745 = vmul.f32 %v555, %v701
  %v746 = vmul.f32 %v555, %v703
  %v747 = vadd.f32 %v743, %v745
  %v748 = vadd.f32 %v744, %v746
  %749 = vrot.lane.b32.xlu0 %v701, 112
  %v750 = vpop.permute.xlu0 %749
  %751 = vrot.lane.b32.xlu0 %v703, 112
  %v752 = vpop.permute.xlu0 %751
  %v753 = vmul.f32 %v564, %v750
  %v754 = vmul.f32 %v564, %v752
  %v755 = vadd.f32 %v747, %v753
  %v756 = vadd.f32 %v748, %v754
  %757 = vrot.lane.b32.xlu0 %v715, 16
  %v758 = vpop.permute.xlu0 %757
  %759 = vrot.lane.b32.xlu0 %v716, 16
  %v760 = vpop.permute.xlu0 %759
  %v761 = vmul.f32 %v573, %v758
  %v762 = vmul.f32 %v573, %v760
  %v763 = vadd.f32 %v755, %v761
  %v764 = vadd.f32 %v756, %v762
  %v765 = vmul.f32 %v578, %v715
  %v766 = vmul.f32 %v578, %v716
  %v767 = vadd.f32 %v763, %v765
  %v768 = vadd.f32 %v764, %v766
  %769 = vrot.lane.b32.xlu0 %v715, 112
  %v770 = vpop.permute.xlu0 %769
  %771 = vrot.lane.b32.xlu0 %v716, 112
  %v772 = vpop.permute.xlu0 %771
  %v773 = vmul.f32 %v587, %v770
  %v774 = vmul.f32 %v587, %v772
  %v775 = vadd.f32 %v767, %v773
  %v776 = vadd.f32 %v768, %v774
  %v777 = vadd.f32 %v775, %v593
  %v778 = vadd.f32 %v776, %v593
  %v779 = vmax.f32 %v777, 0.0
  %v780 = vmax.f32 %v778, 0.0
  %v781 = vpack.c.bf16 %v780, %v779
  %782 = vmatpush.bf16.msra.mxu0 %v486
  %783 = vmatpush.bf16.msra.mxu0 %v485
  %784 = vmatpush.bf16.msra.mxu0 %v484
  %785 = vmatpush.bf16.msra.mxu0 %v483
  %786 = vmatpush.bf16.msra.mxu0 %v482
  %787 = vmatpush.bf16.msra.mxu0 %v481
  %788 = vmatpush.bf16.msra.mxu0 %v480
  %789 = vmatpush.bf16.msra.mxu0 %v479
  %790 = vmatmul.bf16.gmra.mxu0 %v781
  %v791 = vpop.f32.mrf.mxu0
  %v792 = vadd.f32 %v445, %v791
  %v793 = vpop.f32.mrf.mxu0
  %v794 = vadd.f32 %v445, %v793
  %795 = vdwg.mxu0
  %v796 = vrot.slane %v792, 7
  %v797 = vrot.slane %v794, 7
  %v798 = vsel %vm511, %v796, %v797
  %v799 = vsel %vm511, %v797, %v796
  %v800 = vmul.f32 %v799, %v415
  %v801 = vmul.f32 %v798, %v416
  %v802 = vrot.slane %v792, 1
  %v803 = vrot.slane %v794, 1
  %v804 = vsel %vm518, %v802, %v803
  %v805 = vsel %vm518, %v803, %v802
  %v806 = vmul.f32 %v804, %v421
  %v807 = vmul.f32 %v805, %v422
  %808 = vrot.lane.b32.xlu0 %v800, 16
  %v809 = vpop.permute.xlu0 %808
  %810 = vrot.lane.b32.xlu0 %v801, 16
  %v811 = vpop.permute.xlu0 %810
  %v812 = vmul.f32 %v527, %v809
  %v813 = vmul.f32 %v527, %v811
  %v814 = vadd.f32 %v812, 0.0
  %v815 = vadd.f32 %v813, 0.0
  %v816 = vmul.f32 %v532, %v800
  %v817 = vmul.f32 %v532, %v801
  %v818 = vadd.f32 %v814, %v816
  %v819 = vadd.f32 %v815, %v817
  %820 = vrot.lane.b32.xlu0 %v800, 112
  %v821 = vpop.permute.xlu0 %820
  %822 = vrot.lane.b32.xlu0 %v801, 112
  %v823 = vpop.permute.xlu0 %822
  %v824 = vmul.f32 %v541, %v821
  %v825 = vmul.f32 %v541, %v823
  %v826 = vadd.f32 %v818, %v824
  %v827 = vadd.f32 %v819, %v825
  %828 = vrot.lane.b32.xlu0 %v792, 16
  %v829 = vpop.permute.xlu0 %828
  %830 = vrot.lane.b32.xlu0 %v794, 16
  %v831 = vpop.permute.xlu0 %830
  %v832 = vmul.f32 %v550, %v829
  %v833 = vmul.f32 %v550, %v831
  %v834 = vadd.f32 %v826, %v832
  %v835 = vadd.f32 %v827, %v833
  %v836 = vmul.f32 %v555, %v792
  %v837 = vmul.f32 %v555, %v794
  %v838 = vadd.f32 %v834, %v836
  %v839 = vadd.f32 %v835, %v837
  %840 = vrot.lane.b32.xlu0 %v792, 112
  %v841 = vpop.permute.xlu0 %840
  %842 = vrot.lane.b32.xlu0 %v794, 112
  %v843 = vpop.permute.xlu0 %842
  %v844 = vmul.f32 %v564, %v841
  %v845 = vmul.f32 %v564, %v843
  %v846 = vadd.f32 %v838, %v844
  %v847 = vadd.f32 %v839, %v845
  %848 = vrot.lane.b32.xlu0 %v806, 16
  %v849 = vpop.permute.xlu0 %848
  %850 = vrot.lane.b32.xlu0 %v807, 16
  %v851 = vpop.permute.xlu0 %850
  %v852 = vmul.f32 %v573, %v849
  %v853 = vmul.f32 %v573, %v851
  %v854 = vadd.f32 %v846, %v852
  %v855 = vadd.f32 %v847, %v853
  %v856 = vmul.f32 %v578, %v806
  %v857 = vmul.f32 %v578, %v807
  %v858 = vadd.f32 %v854, %v856
  %v859 = vadd.f32 %v855, %v857
  %860 = vrot.lane.b32.xlu0 %v806, 112
  %v861 = vpop.permute.xlu0 %860
  %862 = vrot.lane.b32.xlu0 %v807, 112
  %v863 = vpop.permute.xlu0 %862
  %v864 = vmul.f32 %v587, %v861
  %v865 = vmul.f32 %v587, %v863
  %v866 = vadd.f32 %v858, %v864
  %v867 = vadd.f32 %v859, %v865
  %v868 = vadd.f32 %v866, %v593
  %v869 = vadd.f32 %v867, %v593
  %v870 = vmax.f32 %v868, 0.0
  %v871 = vmax.f32 %v869, 0.0
  %v872 = vld [vmem:[%s7] sm:$0xff]
  %v873 = vld [vmem:[%s7 + $0x8] sm:$0xff]
  %v874 = vld [vmem:[%s7 + $0x10] sm:$0xff]
  %v875 = vld [vmem:[%s7 + $0x18] sm:$0xff]
  %v876 = vld [vmem:[%s7 + $0x20] sm:$0xff]
  %v877 = vld [vmem:[%s7 + $0x28] sm:$0xff]
  %v878 = vld [vmem:[%s7 + $0x30] sm:$0xff]
  %v879 = vld [vmem:[%s7 + $0x38] sm:$0xff]
  %v880 = vld [vmem:[%s7 + $0x40] sm:$0xff]
  %v881 = vld [vmem:[%s7 + $0x48] sm:$0xff]
  %v882 = vld [vmem:[%s7 + $0x50] sm:$0xff]
  %v883 = vld [vmem:[%s7 + $0x58] sm:$0xff]
  %v884 = vld [vmem:[%s7 + $0x60] sm:$0xff]
  %v885 = vld [vmem:[%s7 + $0x68] sm:$0xff]
  %v886 = vld [vmem:[%s7 + $0x70] sm:$0xff]
  %v887 = vld [vmem:[%s7 + $0x78] sm:$0xff]
  %v888 = vld [vmem:[%s8] sm:$0x1]
  %v889 = vld [vmem:[%s9] sm:$0xff]
  %v890 = vld [vmem:[%s10] sm:$0x1]
  %v891 = vrot.slane %v597, 4
  %v892 = vadd.f32 %v597, %v891
  %v893 = vrot.slane %v892, 2
  %v894 = vadd.f32 %v892, %v893
  %v895 = vrot.slane %v894, 1
  %v896 = vadd.f32 %v894, %v895
  %v897 = vrot.slane %v598, 4
  %v898 = vadd.f32 %v598, %v897
  %v899 = vrot.slane %v898, 2
  %v900 = vadd.f32 %v898, %v899
  %v901 = vrot.slane %v900, 1
  %v902 = vadd.f32 %v900, %v901
  %v904 = vperm.slane %v888, 0
  %vm908 = vcmask 1041409
  %v909 = vsel %vm908, %v902, %v896
  %911 = vmatpush.msra.mxu0 %v887
  %912 = vmatpush.msra.mxu0 %v886
  %913 = vmatpush.msra.mxu0 %v885
  %914 = vmatpush.msra.mxu0 %v884
  %915 = vmatpush.msra.mxu0 %v883
  %916 = vmatpush.msra.mxu0 %v882
  %917 = vmatpush.msra.mxu0 %v881
  %918 = vmatpush.msra.mxu0 %v880
  %919 = vmatpush.msra.mxu0 %v879
  %920 = vmatpush.msra.mxu0 %v878
  %921 = vmatpush.msra.mxu0 %v877
  %922 = vmatpush.msra.mxu0 %v876
  %923 = vmatpush.msra.mxu0 %v875
  %924 = vmatpush.msra.mxu0 %v874
  %925 = vmatpush.msra.mxu0 %v873
  %926 = vmatpush.msra.mxu0 %v872
  %927 = vmatmul.f32.gmra.mxu0 %v909
  %v928 = vpop.f32.mrf.mxu0
  %v929 = vadd.f32 %v904, %v928
  %930 = vdwg.mxu0
  %v931 = vmax.f32 %v929, 0.0
  %v933 = vperm.slane %v890, 0
  %vm935 = vcmask 64512
  %v937 = vsel %vm935, %v931, 0
  %939 = vmatpush.msra.mxu0 0.0
  %940 = vmatpush.msra.mxu0 0.0
  %941 = vmatpush.msra.mxu0 0.0
  %942 = vmatpush.msra.mxu0 0.0
  %943 = vmatpush.msra.mxu0 0.0
  %944 = vmatpush.msra.mxu0 0.0
  %945 = vmatpush.msra.mxu0 0.0
  %946 = vmatpush.msra.mxu0 0.0
  %947 = vmatpush.msra.mxu0 0.0
  %948 = vmatpush.msra.mxu0 0.0
  %949 = vmatpush.msra.mxu0 0.0
  %950 = vmatpush.msra.mxu0 0.0
  %951 = vmatpush.msra.mxu0 0.0
  %952 = vmatpush.msra.mxu0 0.0
  %953 = vmatpush.msra.mxu0 0.0
  %954 = vmatpush.msra.mxu0 %v889
  %955 = vmatmul.f32.gmra.mxu0 %v937
  %v956 = vpop.f32.mrf.mxu0
  %v957 = vadd.f32 %v933, %v956
  %958 = vdwg.mxu0
  %v959 = vxor.u32 %v957, 2147483648
  %v960 = vmul.f32 %v959, 1.442695
  %v961 = vpow.pop %v960
  %v962 = vadd.f32 %v961, 1.0
  %v963 = vrcp.pop %v962
  %v964 = vmul.f32 %v962, %v963
  %v965 = vsub.f32 1.0, %v964
  %v966 = vmul.f32 %v963, %v965
  %v967 = vadd.f32 %v963, %v966
  %vm968 = vweird.f32 %v962
  %vm969 = vweird.f32 %v963
  %vm970 = vmor %vm968, %vm969
  %v971 = vsel %vm970, %v963, %v967
  %v972 = vand.u32 2147483647, %v962
  %vm973 = vcmp.eq.f32.partialorder %v972, 8.507059e+37
  %v974 = vand.u32 %v962, 2147483648
  %v975 = vor.u32 1.1754944e-38, %v974
  %v976 = vsel %vm973, %v975, %v971
  %v977 = vmul.f32 1.0, %v976
  %v979 = vrot.slane %v977, 1
  %v980 = vperm.slane %v977, 0
  %v981 = vperm.slane %v979, 0
  %v984 = vmul.f32 %v597, %v980
  %v985 = vmul.f32 %v598, %v981
  %v986 = vrot.slane %v688, 4
  %v987 = vadd.f32 %v688, %v986
  %v988 = vrot.slane %v987, 2
  %v989 = vadd.f32 %v987, %v988
  %v990 = vrot.slane %v989, 1
  %v991 = vadd.f32 %v989, %v990
  %v992 = vrot.slane %v689, 4
  %v993 = vadd.f32 %v689, %v992
  %v994 = vrot.slane %v993, 2
  %v995 = vadd.f32 %v993, %v994
  %v996 = vrot.slane %v995, 1
  %v997 = vadd.f32 %v995, %v996
  %v1000 = vsel %vm908, %v997, %v991
  %1002 = vmatpush.msra.mxu0 %v887
  %1003 = vmatpush.msra.mxu0 %v886
  %1004 = vmatpush.msra.mxu0 %v885
  %1005 = vmatpush.msra.mxu0 %v884
  %1006 = vmatpush.msra.mxu0 %v883
  %1007 = vmatpush.msra.mxu0 %v882
  %1008 = vmatpush.msra.mxu0 %v881
  %1009 = vmatpush.msra.mxu0 %v880
  %1010 = vmatpush.msra.mxu0 %v879
  %1011 = vmatpush.msra.mxu0 %v878
  %1012 = vmatpush.msra.mxu0 %v877
  %1013 = vmatpush.msra.mxu0 %v876
  %1014 = vmatpush.msra.mxu0 %v875
  %1015 = vmatpush.msra.mxu0 %v874
  %1016 = vmatpush.msra.mxu0 %v873
  %1017 = vmatpush.msra.mxu0 %v872
  %1018 = vmatmul.f32.gmra.mxu0 %v1000
  %v1019 = vpop.f32.mrf.mxu0
  %v1020 = vadd.f32 %v904, %v1019
  %1021 = vdwg.mxu0
  %v1022 = vmax.f32 %v1020, 0.0
  %v1024 = vsel %vm935, %v1022, 0
  %1026 = vmatpush.msra.mxu0 0.0
  %1027 = vmatpush.msra.mxu0 0.0
  %1028 = vmatpush.msra.mxu0 0.0
  %1029 = vmatpush.msra.mxu0 0.0
  %1030 = vmatpush.msra.mxu0 0.0
  %1031 = vmatpush.msra.mxu0 0.0
  %1032 = vmatpush.msra.mxu0 0.0
  %1033 = vmatpush.msra.mxu0 0.0
  %1034 = vmatpush.msra.mxu0 0.0
  %1035 = vmatpush.msra.mxu0 0.0
  %1036 = vmatpush.msra.mxu0 0.0
  %1037 = vmatpush.msra.mxu0 0.0
  %1038 = vmatpush.msra.mxu0 0.0
  %1039 = vmatpush.msra.mxu0 0.0
  %1040 = vmatpush.msra.mxu0 0.0
  %1041 = vmatpush.msra.mxu0 %v889
  %1042 = vmatmul.f32.gmra.mxu0 %v1024
  %v1043 = vpop.f32.mrf.mxu0
  %v1044 = vadd.f32 %v933, %v1043
  %1045 = vdwg.mxu0
  %v1046 = vxor.u32 %v1044, 2147483648
  %v1047 = vmul.f32 %v1046, 1.442695
  %v1048 = vpow.pop %v1047
  %v1049 = vadd.f32 %v1048, 1.0
  %v1050 = vrcp.pop %v1049
  %v1051 = vmul.f32 %v1049, %v1050
  %v1052 = vsub.f32 1.0, %v1051
  %v1053 = vmul.f32 %v1050, %v1052
  %v1054 = vadd.f32 %v1050, %v1053
  %vm1055 = vweird.f32 %v1049
  %vm1056 = vweird.f32 %v1050
  %vm1057 = vmor %vm1055, %vm1056
  %v1058 = vsel %vm1057, %v1050, %v1054
  %v1059 = vand.u32 2147483647, %v1049
  %vm1060 = vcmp.eq.f32.partialorder %v1059, 8.507059e+37
  %v1061 = vand.u32 %v1049, 2147483648
  %v1062 = vor.u32 1.1754944e-38, %v1061
  %v1063 = vsel %vm1060, %v1062, %v1058
  %v1064 = vmul.f32 1.0, %v1063
  %v1066 = vrot.slane %v1064, 1
  %v1067 = vperm.slane %v1064, 0
  %v1068 = vperm.slane %v1066, 0
  %v1071 = vmul.f32 %v688, %v1067
  %v1072 = vmul.f32 %v689, %v1068
  %v1073 = vadd.f32 %v984, %v1071
  %v1074 = vadd.f32 %v985, %v1072
  %v1075 = vrot.slane %v779, 4
  %v1076 = vadd.f32 %v779, %v1075
  %v1077 = vrot.slane %v1076, 2
  %v1078 = vadd.f32 %v1076, %v1077
  %v1079 = vrot.slane %v1078, 1
  %v1080 = vadd.f32 %v1078, %v1079
  %v1081 = vrot.slane %v780, 4
  %v1082 = vadd.f32 %v780, %v1081
  %v1083 = vrot.slane %v1082, 2
  %v1084 = vadd.f32 %v1082, %v1083
  %v1085 = vrot.slane %v1084, 1
  %v1086 = vadd.f32 %v1084, %v1085
  %v1089 = vsel %vm908, %v1086, %v1080
  %1091 = vmatpush.msra.mxu0 %v887
  %1092 = vmatpush.msra.mxu0 %v886
  %1093 = vmatpush.msra.mxu0 %v885
  %1094 = vmatpush.msra.mxu0 %v884
  %1095 = vmatpush.msra.mxu0 %v883
  %1096 = vmatpush.msra.mxu0 %v882
  %1097 = vmatpush.msra.mxu0 %v881
  %1098 = vmatpush.msra.mxu0 %v880
  %1099 = vmatpush.msra.mxu0 %v879
  %1100 = vmatpush.msra.mxu0 %v878
  %1101 = vmatpush.msra.mxu0 %v877
  %1102 = vmatpush.msra.mxu0 %v876
  %1103 = vmatpush.msra.mxu0 %v875
  %1104 = vmatpush.msra.mxu0 %v874
  %1105 = vmatpush.msra.mxu0 %v873
  %1106 = vmatpush.msra.mxu0 %v872
  %1107 = vmatmul.f32.gmra.mxu0 %v1089
  %v1108 = vpop.f32.mrf.mxu0
  %v1109 = vadd.f32 %v904, %v1108
  %1110 = vdwg.mxu0
  %v1111 = vmax.f32 %v1109, 0.0
  %v1113 = vsel %vm935, %v1111, 0
  %1115 = vmatpush.msra.mxu0 0.0
  %1116 = vmatpush.msra.mxu0 0.0
  %1117 = vmatpush.msra.mxu0 0.0
  %1118 = vmatpush.msra.mxu0 0.0
  %1119 = vmatpush.msra.mxu0 0.0
  %1120 = vmatpush.msra.mxu0 0.0
  %1121 = vmatpush.msra.mxu0 0.0
  %1122 = vmatpush.msra.mxu0 0.0
  %1123 = vmatpush.msra.mxu0 0.0
  %1124 = vmatpush.msra.mxu0 0.0
  %1125 = vmatpush.msra.mxu0 0.0
  %1126 = vmatpush.msra.mxu0 0.0
  %1127 = vmatpush.msra.mxu0 0.0
  %1128 = vmatpush.msra.mxu0 0.0
  %1129 = vmatpush.msra.mxu0 0.0
  %1130 = vmatpush.msra.mxu0 %v889
  %1131 = vmatmul.f32.gmra.mxu0 %v1113
  %v1132 = vpop.f32.mrf.mxu0
  %v1133 = vadd.f32 %v933, %v1132
  %1134 = vdwg.mxu0
  %v1135 = vxor.u32 %v1133, 2147483648
  %v1136 = vmul.f32 %v1135, 1.442695
  %v1137 = vpow.pop %v1136
  %v1138 = vadd.f32 %v1137, 1.0
  %v1139 = vrcp.pop %v1138
  %v1140 = vmul.f32 %v1138, %v1139
  %v1141 = vsub.f32 1.0, %v1140
  %v1142 = vmul.f32 %v1139, %v1141
  %v1143 = vadd.f32 %v1139, %v1142
  %vm1144 = vweird.f32 %v1138
  %vm1145 = vweird.f32 %v1139
  %vm1146 = vmor %vm1144, %vm1145
  %v1147 = vsel %vm1146, %v1139, %v1143
  %v1148 = vand.u32 2147483647, %v1138
  %vm1149 = vcmp.eq.f32.partialorder %v1148, 8.507059e+37
  %v1150 = vand.u32 %v1138, 2147483648
  %v1151 = vor.u32 1.1754944e-38, %v1150
  %v1152 = vsel %vm1149, %v1151, %v1147
  %v1153 = vmul.f32 1.0, %v1152
  %v1155 = vrot.slane %v1153, 1
  %v1156 = vperm.slane %v1153, 0
  %v1157 = vperm.slane %v1155, 0
  %v1160 = vmul.f32 %v779, %v1156
  %v1161 = vmul.f32 %v780, %v1157
  %v1162 = vadd.f32 %v1073, %v1160
  %v1163 = vadd.f32 %v1074, %v1161
  %v1164 = vrot.slane %v870, 4
  %v1165 = vadd.f32 %v870, %v1164
  %v1166 = vrot.slane %v1165, 2
  %v1167 = vadd.f32 %v1165, %v1166
  %v1168 = vrot.slane %v1167, 1
  %v1169 = vadd.f32 %v1167, %v1168
  %v1170 = vrot.slane %v871, 4
  %v1171 = vadd.f32 %v871, %v1170
  %v1172 = vrot.slane %v1171, 2
  %v1173 = vadd.f32 %v1171, %v1172
  %v1174 = vrot.slane %v1173, 1
  %v1175 = vadd.f32 %v1173, %v1174
  %v1178 = vsel %vm908, %v1175, %v1169
  %1180 = vmatpush.msra.mxu0 %v887
  %1181 = vmatpush.msra.mxu0 %v886
  %1182 = vmatpush.msra.mxu0 %v885
  %1183 = vmatpush.msra.mxu0 %v884
  %1184 = vmatpush.msra.mxu0 %v883
  %1185 = vmatpush.msra.mxu0 %v882
  %1186 = vmatpush.msra.mxu0 %v881
  %1187 = vmatpush.msra.mxu0 %v880
  %1188 = vmatpush.msra.mxu0 %v879
  %1189 = vmatpush.msra.mxu0 %v878
  %1190 = vmatpush.msra.mxu0 %v877
  %1191 = vmatpush.msra.mxu0 %v876
  %1192 = vmatpush.msra.mxu0 %v875
  %1193 = vmatpush.msra.mxu0 %v874
  %1194 = vmatpush.msra.mxu0 %v873
  %1195 = vmatpush.msra.mxu0 %v872
  %1196 = vmatmul.f32.gmra.mxu0 %v1178
  %v1197 = vpop.f32.mrf.mxu0
  %v1198 = vadd.f32 %v904, %v1197
  %1199 = vdwg.mxu0
  %v1200 = vmax.f32 %v1198, 0.0
  %v1202 = vsel %vm935, %v1200, 0
  %1204 = vmatpush.msra.mxu0 0.0
  %1205 = vmatpush.msra.mxu0 0.0
  %1206 = vmatpush.msra.mxu0 0.0
  %1207 = vmatpush.msra.mxu0 0.0
  %1208 = vmatpush.msra.mxu0 0.0
  %1209 = vmatpush.msra.mxu0 0.0
  %1210 = vmatpush.msra.mxu0 0.0
  %1211 = vmatpush.msra.mxu0 0.0
  %1212 = vmatpush.msra.mxu0 0.0
  %1213 = vmatpush.msra.mxu0 0.0
  %1214 = vmatpush.msra.mxu0 0.0
  %1215 = vmatpush.msra.mxu0 0.0
  %1216 = vmatpush.msra.mxu0 0.0
  %1217 = vmatpush.msra.mxu0 0.0
  %1218 = vmatpush.msra.mxu0 0.0
  %1219 = vmatpush.msra.mxu0 %v889
  %1220 = vmatmul.f32.gmra.mxu0 %v1202
  %v1221 = vpop.f32.mrf.mxu0
  %v1222 = vadd.f32 %v933, %v1221
  %1223 = vdwg.mxu0
  %v1224 = vxor.u32 %v1222, 2147483648
  %v1225 = vmul.f32 %v1224, 1.442695
  %v1226 = vpow.pop %v1225
  %v1227 = vadd.f32 %v1226, 1.0
  %v1228 = vrcp.pop %v1227
  %v1229 = vmul.f32 %v1227, %v1228
  %v1230 = vsub.f32 1.0, %v1229
  %v1231 = vmul.f32 %v1228, %v1230
  %v1232 = vadd.f32 %v1228, %v1231
  %vm1233 = vweird.f32 %v1227
  %vm1234 = vweird.f32 %v1228
  %vm1235 = vmor %vm1233, %vm1234
  %v1236 = vsel %vm1235, %v1228, %v1232
  %v1237 = vand.u32 2147483647, %v1227
  %vm1238 = vcmp.eq.f32.partialorder %v1237, 8.507059e+37
  %v1239 = vand.u32 %v1227, 2147483648
  %v1240 = vor.u32 1.1754944e-38, %v1239
  %v1241 = vsel %vm1238, %v1240, %v1236
  %v1242 = vmul.f32 1.0, %v1241
  %v1244 = vrot.slane %v1242, 1
  %v1245 = vperm.slane %v1242, 0
  %v1246 = vperm.slane %v1244, 0
  %v1249 = vmul.f32 %v870, %v1245
  %v1250 = vmul.f32 %v871, %v1246
  %v1251 = vadd.f32 %v1162, %v1249
  %v1252 = vadd.f32 %v1163, %v1250
  %v1253 = vpack.c.bf16 %v1252, %v1251
  %v1254 = vld [vmem:[%s11] sm:$0xff]
  %v1255 = vld [vmem:[%s11 + $0x8] sm:$0xff]
  %v1256 = vld [vmem:[%s11 + $0x10] sm:$0xff]
  %v1257 = vld [vmem:[%s11 + $0x18] sm:$0xff]
  %v1258 = vld [vmem:[%s11 + $0x20] sm:$0xff]
  %v1259 = vld [vmem:[%s11 + $0x28] sm:$0xff]
  %v1260 = vld [vmem:[%s11 + $0x30] sm:$0xff]
  %v1261 = vld [vmem:[%s11 + $0x38] sm:$0xff]
  %v1262 = vld [vmem:[%s11 + $0x40] sm:$0xff]
  %v1263 = vld [vmem:[%s11 + $0x48] sm:$0xff]
  %v1264 = vld [vmem:[%s11 + $0x50] sm:$0xff]
  %v1265 = vld [vmem:[%s11 + $0x58] sm:$0xff]
  %v1266 = vld [vmem:[%s11 + $0x60] sm:$0xff]
  %v1267 = vld [vmem:[%s11 + $0x68] sm:$0xff]
  %v1268 = vld [vmem:[%s11 + $0x70] sm:$0xff]
  %v1269 = vld [vmem:[%s11 + $0x78] sm:$0xff]
  %v1270 = vld [vmem:[%s11 + $0x80] sm:$0xff]
  %v1271 = vld [vmem:[%s11 + $0x88] sm:$0xff]
  %v1272 = vld [vmem:[%s11 + $0x90] sm:$0xff]
  %v1273 = vld [vmem:[%s11 + $0x98] sm:$0xff]
  %v1274 = vld [vmem:[%s11 + $0xa0] sm:$0xff]
  %v1275 = vld [vmem:[%s11 + $0xa8] sm:$0xff]
  %v1276 = vld [vmem:[%s11 + $0xb0] sm:$0xff]
  %v1277 = vld [vmem:[%s11 + $0xb8] sm:$0xff]
  %v1278 = vld [vmem:[%s11 + $0xc0] sm:$0xff]
  %v1279 = vld [vmem:[%s11 + $0xc8] sm:$0xff]
  %v1280 = vld [vmem:[%s11 + $0xd0] sm:$0xff]
  %v1281 = vld [vmem:[%s11 + $0xd8] sm:$0xff]
  %v1282 = vld [vmem:[%s11 + $0xe0] sm:$0xff]
  %v1283 = vld [vmem:[%s11 + $0xe8] sm:$0xff]
  %v1284 = vld [vmem:[%s11 + $0xf0] sm:$0xff]
  %v1285 = vld [vmem:[%s11 + $0xf8] sm:$0xff]
  %v1286 = vld [vmem:[%s12] sm:$0xf]
  %v1288 = vperm.slane %v1286, 0
  %v1289 = vperm.slane %v1286, 1
  %v1290 = vperm.slane %v1286, 2
  %v1291 = vperm.slane %v1286, 3
  %v1328 = vunpack.c.l.b16 %v1254
  %v1329 = vunpack.c.h.b16 %v1254
  %v1330 = vunpack.c.l.b16 %v1255
  %v1331 = vunpack.c.h.b16 %v1255
  %v1332 = vunpack.c.l.b16 %v1256
  %v1333 = vunpack.c.h.b16 %v1256
  %v1334 = vunpack.c.l.b16 %v1257
  %v1335 = vunpack.c.h.b16 %v1257
  %v1336 = vunpack.c.l.b16 %v1258
  %v1337 = vunpack.c.h.b16 %v1258
  %v1338 = vunpack.c.l.b16 %v1259
  %v1339 = vunpack.c.h.b16 %v1259
  %v1340 = vunpack.c.l.b16 %v1260
  %v1341 = vunpack.c.h.b16 %v1260
  %v1342 = vunpack.c.l.b16 %v1261
  %v1343 = vunpack.c.h.b16 %v1261
  %v1344 = vunpack.c.l.b16 %v1262
  %v1345 = vunpack.c.h.b16 %v1262
  %v1346 = vunpack.c.l.b16 %v1263
  %v1347 = vunpack.c.h.b16 %v1263
  %v1348 = vunpack.c.l.b16 %v1264
  %v1349 = vunpack.c.h.b16 %v1264
  %v1350 = vunpack.c.l.b16 %v1265
  %v1351 = vunpack.c.h.b16 %v1265
  %v1352 = vunpack.c.l.b16 %v1266
  %v1353 = vunpack.c.h.b16 %v1266
  %v1354 = vunpack.c.l.b16 %v1267
  %v1355 = vunpack.c.h.b16 %v1267
  %v1356 = vunpack.c.l.b16 %v1268
  %v1357 = vunpack.c.h.b16 %v1268
  %v1358 = vunpack.c.l.b16 %v1269
  %v1359 = vunpack.c.h.b16 %v1269
  %v1360 = vunpack.c.l.b16 %v1270
  %v1361 = vunpack.c.h.b16 %v1270
  %v1362 = vunpack.c.l.b16 %v1271
  %v1363 = vunpack.c.h.b16 %v1271
  %v1364 = vunpack.c.l.b16 %v1272
  %v1365 = vunpack.c.h.b16 %v1272
  %v1366 = vunpack.c.l.b16 %v1273
  %v1367 = vunpack.c.h.b16 %v1273
  %v1368 = vunpack.c.l.b16 %v1274
  %v1369 = vunpack.c.h.b16 %v1274
  %v1370 = vunpack.c.l.b16 %v1275
  %v1371 = vunpack.c.h.b16 %v1275
  %v1372 = vunpack.c.l.b16 %v1276
  %v1373 = vunpack.c.h.b16 %v1276
  %v1374 = vunpack.c.l.b16 %v1277
  %v1375 = vunpack.c.h.b16 %v1277
  %v1376 = vunpack.c.l.b16 %v1278
  %v1377 = vunpack.c.h.b16 %v1278
  %v1378 = vunpack.c.l.b16 %v1279
  %v1379 = vunpack.c.h.b16 %v1279
  %v1380 = vunpack.c.l.b16 %v1280
  %v1381 = vunpack.c.h.b16 %v1280
  %v1382 = vunpack.c.l.b16 %v1281
  %v1383 = vunpack.c.h.b16 %v1281
  %v1384 = vunpack.c.l.b16 %v1282
  %v1385 = vunpack.c.h.b16 %v1282
  %v1386 = vunpack.c.l.b16 %v1283
  %v1387 = vunpack.c.h.b16 %v1283
  %v1388 = vunpack.c.l.b16 %v1284
  %v1389 = vunpack.c.h.b16 %v1284
  %v1390 = vunpack.c.l.b16 %v1285
  %v1391 = vunpack.c.h.b16 %v1285
  %v1392 = vpack.c.b16 %v1332, %v1328
  %v1393 = vpack.c.b16 %v1333, %v1329
  %v1394 = vpack.c.b16 %v1334, %v1330
  %v1395 = vpack.c.b16 %v1335, %v1331
  %v1396 = vpack.c.b16 %v1340, %v1336
  %v1397 = vpack.c.b16 %v1341, %v1337
  %v1398 = vpack.c.b16 %v1342, %v1338
  %v1399 = vpack.c.b16 %v1343, %v1339
  %v1400 = vpack.c.b16 %v1348, %v1344
  %v1401 = vpack.c.b16 %v1349, %v1345
  %v1402 = vpack.c.b16 %v1350, %v1346
  %v1403 = vpack.c.b16 %v1351, %v1347
  %v1404 = vpack.c.b16 %v1356, %v1352
  %v1405 = vpack.c.b16 %v1357, %v1353
  %v1406 = vpack.c.b16 %v1358, %v1354
  %v1407 = vpack.c.b16 %v1359, %v1355
  %v1408 = vpack.c.b16 %v1364, %v1360
  %v1409 = vpack.c.b16 %v1365, %v1361
  %v1410 = vpack.c.b16 %v1366, %v1362
  %v1411 = vpack.c.b16 %v1367, %v1363
  %v1412 = vpack.c.b16 %v1372, %v1368
  %v1413 = vpack.c.b16 %v1373, %v1369
  %v1414 = vpack.c.b16 %v1374, %v1370
  %v1415 = vpack.c.b16 %v1375, %v1371
  %v1416 = vpack.c.b16 %v1380, %v1376
  %v1417 = vpack.c.b16 %v1381, %v1377
  %v1418 = vpack.c.b16 %v1382, %v1378
  %v1419 = vpack.c.b16 %v1383, %v1379
  %v1420 = vpack.c.b16 %v1388, %v1384
  %v1421 = vpack.c.b16 %v1389, %v1385
  %v1422 = vpack.c.b16 %v1390, %v1386
  %v1423 = vpack.c.b16 %v1391, %v1387
  %1456 = vmatpush.bf16.msra.mxu0 %v1420
  %1457 = vmatpush.bf16.msra.mxu0 %v1416
  %1458 = vmatpush.bf16.msra.mxu0 %v1412
  %1459 = vmatpush.bf16.msra.mxu0 %v1408
  %1460 = vmatpush.bf16.msra.mxu0 %v1404
  %1461 = vmatpush.bf16.msra.mxu0 %v1400
  %1462 = vmatpush.bf16.msra.mxu0 %v1396
  %1463 = vmatpush.bf16.msra.mxu0 %v1392
  %1464 = vmatmul.bf16.gmra.mxu0 %v1253
  %v1465 = vpop.f32.mrf.mxu0
  %v1466 = vadd.f32 %v1288, %v1465
  %v1467 = vpop.f32.mrf.mxu0
  %v1468 = vadd.f32 %v1288, %v1467
  %1469 = vdwg.mxu0
  %1470 = vmatpush.bf16.msra.mxu0 %v1421
  %1471 = vmatpush.bf16.msra.mxu0 %v1417
  %1472 = vmatpush.bf16.msra.mxu0 %v1413
  %1473 = vmatpush.bf16.msra.mxu0 %v1409
  %1474 = vmatpush.bf16.msra.mxu0 %v1405
  %1475 = vmatpush.bf16.msra.mxu0 %v1401
  %1476 = vmatpush.bf16.msra.mxu0 %v1397
  %1477 = vmatpush.bf16.msra.mxu0 %v1393
  %1478 = vmatmul.bf16.gmra.mxu0 %v1253
  %v1479 = vpop.f32.mrf.mxu0
  %v1480 = vadd.f32 %v1289, %v1479
  %v1481 = vpop.f32.mrf.mxu0
  %v1482 = vadd.f32 %v1289, %v1481
  %1483 = vdwg.mxu0
  %1484 = vmatpush.bf16.msra.mxu0 %v1422
  %1485 = vmatpush.bf16.msra.mxu0 %v1418
  %1486 = vmatpush.bf16.msra.mxu0 %v1414
  %1487 = vmatpush.bf16.msra.mxu0 %v1410
  %1488 = vmatpush.bf16.msra.mxu0 %v1406
  %1489 = vmatpush.bf16.msra.mxu0 %v1402
  %1490 = vmatpush.bf16.msra.mxu0 %v1398
  %1491 = vmatpush.bf16.msra.mxu0 %v1394
  %1492 = vmatmul.bf16.gmra.mxu0 %v1253
  %v1493 = vpop.f32.mrf.mxu0
  %v1494 = vadd.f32 %v1290, %v1493
  %v1495 = vpop.f32.mrf.mxu0
  %v1496 = vadd.f32 %v1290, %v1495
  %1497 = vdwg.mxu0
  %1498 = vmatpush.bf16.msra.mxu0 %v1423
  %1499 = vmatpush.bf16.msra.mxu0 %v1419
  %1500 = vmatpush.bf16.msra.mxu0 %v1415
  %1501 = vmatpush.bf16.msra.mxu0 %v1411
  %1502 = vmatpush.bf16.msra.mxu0 %v1407
  %1503 = vmatpush.bf16.msra.mxu0 %v1403
  %1504 = vmatpush.bf16.msra.mxu0 %v1399
  %1505 = vmatpush.bf16.msra.mxu0 %v1395
  %1506 = vmatmul.bf16.gmra.mxu0 %v1253
  %v1507 = vpop.f32.mrf.mxu0
  %v1508 = vadd.f32 %v1291, %v1507
  %v1509 = vpop.f32.mrf.mxu0
  %v1510 = vadd.f32 %v1291, %v1509
  %1511 = vdwg.mxu0
  %v1512 = vadd.f32 %v56, %v1466
  %v1513 = vadd.f32 %v57, %v1480
  %v1514 = vadd.f32 %v58, %v1494
  %v1515 = vadd.f32 %v59, %v1508
  %v1516 = vadd.f32 %v60, %v1468
  %v1517 = vadd.f32 %v61, %v1482
  %v1518 = vadd.f32 %v62, %v1496
  %v1519 = vadd.f32 %v63, %v1510
  %v1520 = vld [vmem:[%s13] sm:$0xf]
  %v1522 = vperm.slane %v1520, 0
  %v1523 = vperm.slane %v1520, 1
  %v1524 = vperm.slane %v1520, 2
  %v1525 = vperm.slane %v1520, 3
  %v1530 = vmul.f32 %v1512, %v1522
  %v1531 = vmul.f32 %v1513, %v1523
  %v1532 = vmul.f32 %v1514, %v1524
  %v1533 = vmul.f32 %v1515, %v1525
  %v1534 = vmul.f32 %v1516, %v1522
  %v1535 = vmul.f32 %v1517, %v1523
  %v1536 = vmul.f32 %v1518, %v1524
  %v1537 = vmul.f32 %v1519, %v1525
  %v1538 = vld [vmem:[%s14] sm:$0xf]
  %v1540 = vperm.slane %v1538, 0
  %v1541 = vperm.slane %v1538, 1
  %v1542 = vperm.slane %v1538, 2
  %v1543 = vperm.slane %v1538, 3
  %v1548 = vadd.f32 %v1530, %v1540
  %v1549 = vadd.f32 %v1531, %v1541
  %v1550 = vadd.f32 %v1532, %v1542
  %v1551 = vadd.f32 %v1533, %v1543
  %v1552 = vadd.f32 %v1534, %v1540
  %v1553 = vadd.f32 %v1535, %v1541
  %v1554 = vadd.f32 %v1536, %v1542
  %v1555 = vadd.f32 %v1537, %v1543
  %v1556 = vmax.f32 %v1548, 0.0
  %v1557 = vmax.f32 %v1549, 0.0
  %v1558 = vmax.f32 %v1550, 0.0
  %v1559 = vmax.f32 %v1551, 0.0
  %v1560 = vmax.f32 %v1552, 0.0
  %v1561 = vmax.f32 %v1553, 0.0
  %v1562 = vmax.f32 %v1554, 0.0
  %v1563 = vmax.f32 %v1555, 0.0
  %1564 = vst [vmem:[%s17] sm:$0xff] %v1556
  %1565 = vst [vmem:[%s17 + $0x8] sm:$0xff] %v1557
  %1566 = vst [vmem:[%s17 + $0x10] sm:$0xff] %v1558
  %1567 = vst [vmem:[%s17 + $0x18] sm:$0xff] %v1559
  %1568 = vst [vmem:[%s17 + $0x20] sm:$0xff] %v1560
  %1569 = vst [vmem:[%s17 + $0x28] sm:$0xff] %v1561
  %1570 = vst [vmem:[%s17 + $0x30] sm:$0xff] %v1562
  %1571 = vst [vmem:[%s17 + $0x38] sm:$0xff] %v1563
  // Predicated region
  $region70: #{bottleneck_forward.1} parent=0 // pred_check
    _
  $region71: #{bottleneck_forward.1} parent=0 // pred_check_branch
    %1573 = sbr.rel (0) target = $region73
  $region72: #{bottleneck_forward.1} parent=0 // pred_region
    _
  $region73: #{bottleneck_forward.1} parent=0 // pred_fallthru
    _
  // Predicated region
  $region74: #{bottleneck_forward.1} parent=0 // pred_check
    _
  $region75: #{bottleneck_forward.1} parent=0 // pred_check_branch
    %1575 = sbr.rel (0) target = $region77
  $region76: #{bottleneck_forward.1} parent=0 // pred_region
    _
  $region77: #{bottleneck_forward.1} parent=0 // pred_fallthru
    _

</llo_original>
